<compile_context>
chip_gen: v7x
topology: tpu7x:2x2x1
jax: 0.10.0
libtpu: 0.0.40
codegen_flags: <defaults>
</compile_context>

<pallas_src>
import functools
import numpy as np
import jax
import jax.numpy as jnp
from jax import lax
from jax.experimental import pallas as pl
from jax.experimental.pallas import tpu as pltpu

BN_EPS = 1e-5
LANE = 128


def _round_up(a, m):
    return -(-a // m) * m


# ----------------------------------------------------------------------------
# Static (numpy) helpers: interpolation / selection matrices, interior masks
# ----------------------------------------------------------------------------
def _interp_matrix(n_in, n_out):
    """PyTorch bilinear (align_corners=False) 1-D interpolation matrix (n_out, n_in)."""
    A = np.zeros((n_out, n_in), np.float32)
    if n_in == n_out:
        np.fill_diagonal(A, 1.0)
        return A
    scale = n_in / n_out
    for o in range(n_out):
        src = max((o + 0.5) * scale - 0.5, 0.0)
        i0 = min(int(np.floor(src)), n_in - 1)
        i1 = min(i0 + 1, n_in - 1)
        lam = src - i0
        A[o, i0] += 1.0 - lam
        A[o, i1] += lam
    return A


def _interior_mask(H, W, rpl):
    """(1, rpl) mask: 1 on interior pixels of the padded-flat layout, 0 on the
    1-pixel zero-padding ring and on the lane padding."""
    HP, WP = H + 2, W + 2
    m = np.zeros((HP, WP), np.float32)
    m[1:HP - 1, 1:WP - 1] = 1.0
    out = np.zeros((1, rpl), np.float32)
    out[0, :HP * WP] = m.reshape(-1)
    return out


def _upsample_matrix_T(H1, W1, H0, W0, rpl1, rpl0):
    """U^T (rpl1, rpl0): padded-flat branch-1 columns -> padded-flat branch-0
    columns, bilinear align_corners=False.  Only interior rows/cols are nonzero."""
    A_h = _interp_matrix(H1, H0)     # (H0, H1)
    A_w = _interp_matrix(W1, W0)     # (W0, W1)
    WP0, WP1 = W0 + 2, W1 + 2
    UT = np.zeros((rpl1, rpl0), np.float32)
    for p in range(H0):
        for q in range(W0):
            r_out = (p + 1) * WP0 + (q + 1)
            for h in range(H1):
                ah = A_h[p, h]
                if ah == 0.0:
                    continue
                for w in range(W1):
                    aw = A_w[q, w]
                    if aw == 0.0:
                        continue
                    UT[(h + 1) * WP1 + (w + 1), r_out] += ah * aw
    return UT


def _downsample_matrix_T(H0, W0, H1, W1, rpl0, rpl1):
    """D^T (rpl0, rpl1): picks the stride-2 samples of a stride-1 conv output."""
    WP0, WP1 = W0 + 2, W1 + 2
    DT = np.zeros((rpl0, rpl1), np.float32)
    for oi in range(H1):
        for oj in range(W1):
            DT[(2 * oi + 1) * WP0 + (2 * oj + 1), (oi + 1) * WP1 + (oj + 1)] = 1.0
    return DT


# ----------------------------------------------------------------------------
# The single fused Pallas kernel (one grid step == one image)
# ----------------------------------------------------------------------------
def _hrm_kernel(x0_ref, x1_ref, m0_ref, m1_ref,
                w10_ref, b10_ref, w20_ref, b20_ref,
                w11_ref, b11_ref, w21_ref, b21_ref,
                wf01_ref, bf01_ref, wf10_ref, bf10_ref,
                ut_ref, dt_ref,
                out0_ref, out1_ref,
                *, WP0, WP1, RPL0, RPL1):
    m0 = m0_ref[...]                      # (1, RPL0)
    m1 = m1_ref[...]                      # (1, RPL1)

    def conv3x3(x, wp, rpl, w9_ref, bias=None, residual=None, relu=False, mask=None):
        """3x3 stride-1 conv on the (C, padded-flat-spatial) layout as a SINGLE
        bf16 MXU matmul with K = 9*Cin.  The 9 taps are lane rotations; any
        wrap-around only lands on masked padding positions."""
        taps = []
        for ki in range(3):
            for kj in range(3):
                d = (ki - 1) * wp + (kj - 1)
                taps.append(x if d == 0 else pltpu.roll(x, (-d) % rpl, 1))
        x9 = jnp.concatenate(taps, axis=0).astype(jnp.bfloat16)   # (9*Cin_p, RPL)
        acc = jnp.dot(w9_ref[...], x9,
                      preferred_element_type=jnp.float32)          # (Cout_p, RPL)
        if bias is not None:
            acc = acc + bias
        if residual is not None:
            acc = acc + residual
        if relu:
            acc = jnp.maximum(acc, 0.0)
        if mask is not None:
            acc = acc * mask        # re-zero padding ring / lane pad for re-use
        return acc

    x0 = x0_ref[0]    # (C0p, RPL0)  zero-padded ring, zero lane padding
    x1 = x1_ref[0]    # (C1p, RPL1)

    # ---- branch 0 : BasicBlock (conv-bn-relu, conv-bn, +residual, relu) ------
    h0 = conv3x3(x0, WP0, RPL0, w10_ref, bias=b10_ref[...], relu=True, mask=m0)
    x0b = conv3x3(h0, WP0, RPL0, w20_ref, bias=b20_ref[...], residual=x0,
                  relu=True, mask=m0)

    # ---- branch 1 : BasicBlock ------------------------------------------------
    h1 = conv3x3(x1, WP1, RPL1, w11_ref, bias=b11_ref[...], relu=True, mask=m1)
    x1b = conv3x3(h1, WP1, RPL1, w21_ref, bias=b21_ref[...], residual=x1, relu=True)

    # ---- fuse output 0 : relu(x0b + bilinear_up(conv1x1_bn(x1b))) -------------
    t = jnp.dot(wf01_ref[...], x1b.astype(jnp.bfloat16),
                preferred_element_type=jnp.float32) + bf01_ref[...]   # (C0p, RPL1)
    up = jnp.dot(t.astype(jnp.bfloat16), ut_ref[...],
                 preferred_element_type=jnp.float32)                  # (C0p, RPL0)
    out0_ref[0] = jnp.maximum(x0b + up, 0.0)

    # ---- fuse output 1 : relu(x1b + conv3x3_stride2_bn(x0b)) ------------------
    # stride-1 conv (M=8, cheap) followed by a stride-2 selection matmul.
    z = conv3x3(x0b, WP0, RPL0, wf10_ref)                             # (C1p, RPL0)
    dn = jnp.dot(z.astype(jnp.bfloat16), dt_ref[...],
                 preferred_element_type=jnp.float32)                  # (C1p, RPL1)
    out1_ref[0] = jnp.maximum(x1b + dn + bf10_ref[...], 0.0) * m1


# ----------------------------------------------------------------------------
# Parameter preparation: fold BN, pad channels to x8, build matrices (bf16)
# ----------------------------------------------------------------------------
def prepare_kernel_params(params, H0, W0, H1, W1):
    RPL0 = _round_up((H0 + 2) * (W0 + 2), LANE)
    RPL1 = _round_up((H1 + 2) * (W1 + 2), LANE)

    def scale_of(g):
        # TODO(synk): inference-mode fold (running_mean=0, running_var=1).
        return g / jnp.sqrt(1.0 + BN_EPS)

    def conv3_w(w, g, cinp, coutp):
        cin, cout = w.shape[2], w.shape[3]
        wf = (w * scale_of(g)).astype(jnp.float32)
        wf = jnp.pad(wf, ((0, 0), (0, 0), (0, cinp - cin), (0, coutp - cout)))
        # (3,3,cinp,coutp) -> (coutp, 9*cinp): w9[co, (ki*3+kj)*cinp + ci]
        return jnp.transpose(wf, (3, 0, 1, 2)).reshape(coutp, 9 * cinp).astype(jnp.bfloat16)

    def conv1_w(w, g, cinp, coutp):
        cin, cout = w.shape[2], w.shape[3]
        wf = (w * scale_of(g)).astype(jnp.float32)
        wf = jnp.pad(wf, ((0, 0), (0, 0), (0, cinp - cin), (0, coutp - cout)))
        return jnp.transpose(wf[0, 0], (1, 0)).astype(jnp.bfloat16)   # (coutp, cinp)

    def bias_col(b, cp):
        return jnp.pad(b, (0, cp - b.shape[0])).reshape(cp, 1).astype(jnp.float32)

    assert len(params['branches']) == 2
    assert all(len(b) == 1 for b in params['branches'])   # num_blocks = [1, 1]
    blk0 = params['branches'][0][0]
    blk1 = params['branches'][1][0]
    f01, f10 = params['fuse_01'], params['fuse_10']

    C0 = blk0['w1'].shape[3]
    C1 = blk1['w1'].shape[3]
    C0p, C1p = _round_up(C0, 8), _round_up(C1, 8)

    kp = dict(
        w10=conv3_w(blk0['w1'], blk0['g1'], C0p, C0p), b10=bias_col(blk0['b1'], C0p),
        w20=conv3_w(blk0['w2'], blk0['g2'], C0p, C0p), b20=bias_col(blk0['b2'], C0p),
        w11=conv3_w(blk1['w1'], blk1['g1'], C1p, C1p), b11=bias_col(blk1['b1'], C1p),
        w21=conv3_w(blk1['w2'], blk1['g2'], C1p, C1p), b21=bias_col(blk1['b2'], C1p),
        wf01=conv1_w(f01['w'], f01['g'], C1p, C0p), bf01=bias_col(f01['b'], C0p),
        wf10=conv3_w(f10['w'], f10['g'], C0p, C1p), bf10=bias_col(f10['b'], C1p),
        m0=jnp.asarray(_interior_mask(H0, W0, RPL0)),
        m1=jnp.asarray(_interior_mask(H1, W1, RPL1)),
        UT=jnp.asarray(_upsample_matrix_T(H1, W1, H0, W0, RPL1, RPL0)).astype(jnp.bfloat16),
        DT=jnp.asarray(_downsample_matrix_T(H0, W0, H1, W1, RPL0, RPL1)).astype(jnp.bfloat16),
    )
    return kp


# ----------------------------------------------------------------------------
# Wrapper: one pallas_call for the whole module (NCHW in / NCHW out)
# ----------------------------------------------------------------------------
def hrm_forward_pallas(x0, x1, kp):
    """x0:(N,C0,H0,W0), x1:(N,C1,H1,W1) NCHW; kp from prepare_kernel_params."""
    N, C0, H0, W0 = x0.shape
    _, C1, H1, W1 = x1.shape
    C0p = kp['b10'].shape[0]
    C1p = kp['b11'].shape[0]
    HP0, WP0, HP1, WP1 = H0 + 2, W0 + 2, H1 + 2, W1 + 2
    RP0, RP1 = HP0 * WP0, HP1 * WP1
    RPL0 = kp['m0'].shape[1]
    RPL1 = kp['m1'].shape[1]

    def to_flat(x, cp, rpl):
        n, c, h, w = x.shape
        xp = jnp.pad(x, ((0, 0), (0, cp - c), (1, 1), (1, 1)))
        xp = xp.reshape(n, cp, (h + 2) * (w + 2))
        return jnp.pad(xp, ((0, 0), (0, 0), (0, rpl - (h + 2) * (w + 2))))

    x0e = to_flat(x0, C0p, RPL0)     # (N, C0p, RPL0)  lane-dense, 128-padded
    x1e = to_flat(x1, C1p, RPL1)     # (N, C1p, RPL1)

    kernel = functools.partial(_hrm_kernel, WP0=WP0, WP1=WP1, RPL0=RPL0, RPL1=RPL1)

    def bcast(a):
        return pl.BlockSpec(a.shape, lambda n: (0,) * a.ndim)

    def per_img(a):
        return pl.BlockSpec((1,) + a.shape[1:], lambda n: (n, 0, 0))

    inputs = [x0e, x1e, kp['m0'], kp['m1'],
              kp['w10'], kp['b10'], kp['w20'], kp['b20'],
              kp['w11'], kp['b11'], kp['w21'], kp['b21'],
              kp['wf01'], kp['bf01'], kp['wf10'], kp['bf10'],
              kp['UT'], kp['DT']]
    in_specs = [per_img(x0e), per_img(x1e)] + [bcast(a) for a in inputs[2:]]

    out_shape = (jax.ShapeDtypeStruct((N, C0p, RPL0), jnp.float32),
                 jax.ShapeDtypeStruct((N, C1p, RPL1), jnp.float32))
    out_specs = (pl.BlockSpec((1, C0p, RPL0), lambda n: (n, 0, 0)),
                 pl.BlockSpec((1, C1p, RPL1), lambda n: (n, 0, 0)))

    out0p, out1p = pl.pallas_call(
        kernel,
        out_shape=out_shape,
        grid=(N,),
        in_specs=in_specs,
        out_specs=out_specs,
        compiler_params=pltpu.CompilerParams(
            dimension_semantics=("parallel",)),   # shards batch across v7x's 2 TCs
    )(*inputs)

    # Crop lane padding, padding ring and channel padding exactly once, at the end.
    out0 = out0p[:, :C0, :RP0].reshape(N, C0, HP0, WP0)[:, :, 1:H0 + 1, 1:W0 + 1]
    out1 = out1p[:, :C1, :RP1].reshape(N, C1, HP1, WP1)[:, :, 1:H1 + 1, 1:W1 + 1]
    return [out0, out1]


# ----------------------------------------------------------------------------
# Pure-JAX reference (lax.conv + einsum, f32 HIGHEST) for the numerical check
# ----------------------------------------------------------------------------
def ref_conv_bn(x, w, g, b, stride=1, relu=False, residual=None):
    pad = (w.shape[0] - 1) // 2
    y = lax.conv_general_dilated(x, w, (stride, stride), [(pad, pad), (pad, pad)],
                                 dimension_numbers=('NCHW', 'HWIO', 'NCHW'),
                                 precision=lax.Precision.HIGHEST)
    y = y * (g / jnp.sqrt(1.0 + BN_EPS)).reshape(1, -1, 1, 1) + b.reshape(1, -1, 1, 1)
    if residual is not None:
        y = y + residual
    if relu:
        y = jnp.maximum(y, 0.0)
    return y


def hrm_forward_ref(x_list, params, A_h, A_w):
    xb = []
    for bi, x in enumerate(x_list):
        out = x
        for blk in params['branches'][bi]:
            h = ref_conv_bn(out, blk['w1'], blk['g1'], blk['b1'], 1, relu=True)
            out = ref_conv_bn(h, blk['w2'], blk['g2'], blk['b2'], 1, relu=True, residual=out)
        xb.append(out)
    x0, x1 = xb
    f01 = params['fuse_01']
    t = ref_conv_bn(x1, f01['w'], f01['g'], f01['b'], 1)
    up = jnp.einsum('ph,nchw,qw->ncpq', A_h, t, A_w, precision=lax.Precision.HIGHEST)
    out0 = jnp.maximum(x0 + up, 0.0)
    f10 = params['fuse_10']
    out1 = ref_conv_bn(x0, f10['w'], f10['g'], f10['b'], 2, relu=True, residual=x1)
    return [out0, out1]


# ----------------------------------------------------------------------------
# Deterministic parameter init (shapes follow HighResolutionModule.__init__)
# ----------------------------------------------------------------------------
def _conv_init(key, kh, kw, cin, cout):
    fan = kh * kw * cin
    return jax.random.normal(key, (kh, kw, cin, cout), jnp.float32) / np.sqrt(fan)


def _bn_init(key, c):
    k1, k2 = jax.random.split(key)
    g = 1.0 + 0.1 * jax.random.normal(k1, (c,), jnp.float32)
    b = 0.1 * jax.random.normal(k2, (c,), jnp.float32)
    return g, b


def build_params(key, num_inchannels, num_channels, num_blocks):
    keys = iter(jax.random.split(key, 64))
    params = {'branches': []}
    for bi in range(2):
        blocks = []
        cin = num_inchannels[bi]
        cout = num_channels[bi]            # BasicBlock.expansion == 1
        for _ in range(num_blocks[bi]):
            w1 = _conv_init(next(keys), 3, 3, cin, cout)
            g1, b1 = _bn_init(next(keys), cout)
            w2 = _conv_init(next(keys), 3, 3, cout, cout)
            g2, b2 = _bn_init(next(keys), cout)
            blocks.append(dict(w1=w1, g1=g1, b1=b1, w2=w2, g2=g2, b2=b2))
            cin = cout
        params['branches'].append(blocks)
    # fuse_layers[0][1]: 1x1 conv (C1 -> C0) + BN
    w = _conv_init(next(keys), 1, 1, num_inchannels[1], num_inchannels[0])
    g, b = _bn_init(next(keys), num_inchannels[0])
    params['fuse_01'] = dict(w=w, g=g, b=b)
    # fuse_layers[1][0]: 3x3 stride-2 conv (C0 -> C1) + BN (no relu, last in chain)
    w = _conv_init(next(keys), 3, 3, num_inchannels[0], num_inchannels[1])
    g, b = _bn_init(next(keys), num_inchannels[1])
    params['fuse_10'] = dict(w=w, g=g, b=b)
    return params


if __name__ == "__main__":
    key = jax.random.PRNGKey(0)
    k_in0, k_in1, k_par = jax.random.split(key, 3)

    N = 2
    num_inchannels = [4, 8]
    num_channels = [4, 8]
    num_blocks = [1, 1]
    H0, W0 = 16, 16
    H1, W1 = 8, 8

    # PyTorch-layout NCHW inputs (used directly; kernel layout is built in-wrapper)
    x0 = jax.random.normal(k_in0, (N, num_inchannels[0], H0, W0), jnp.float32)
    x1 = jax.random.normal(k_in1, (N, num_inchannels[1], H1, W1), jnp.float32)

    params = build_params(k_par, num_inchannels, num_channels, num_blocks)
    kparams = prepare_kernel_params(params, H0, W0, H1, W1)

    fwd = jax.jit(hrm_forward_pallas)
    outs = fwd(x0, x1, kparams)
    outs = [jax.block_until_ready(o) for o in outs]

    A_h = jnp.asarray(_interp_matrix(H1, H0))
    A_w = jnp.asarray(_interp_matrix(W1, W0))
    refs = hrm_forward_ref([x0, x1], params, A_h, A_w)
    refs = [jax.block_until_ready(r) for r in refs]

    # Tolerance widened (knowingly) vs. the f32 version: all MXU operands are
    # bf16 (per perf review); reference stays f32/HIGHEST.  Layout / tap-shift
    # bugs would still show up as O(1) errors, far above this bound.
    for o, r in zip(outs, refs):
        np.testing.assert_allclose(np.asarray(o), np.asarray(r), rtol=5e-2, atol=1e-1)

    print("KERNEL_OK")
</pallas_src>

<mosaic_0001>
module attributes {stable_mosaic.version = 11 : i64} {
  func.func @_hrm_kernel(%arg0: i32, %arg1: memref<1x8x384xf32, #tpu.memory_space<vmem>>, %arg2: memref<1x8x128xf32, #tpu.memory_space<vmem>>, %arg3: memref<1x384xf32, #tpu.memory_space<vmem>>, %arg4: memref<1x128xf32, #tpu.memory_space<vmem>>, %arg5: memref<8x72xbf16, #tpu.memory_space<vmem>>, %arg6: memref<8x1xf32, #tpu.memory_space<vmem>>, %arg7: memref<8x72xbf16, #tpu.memory_space<vmem>>, %arg8: memref<8x1xf32, #tpu.memory_space<vmem>>, %arg9: memref<8x72xbf16, #tpu.memory_space<vmem>>, %arg10: memref<8x1xf32, #tpu.memory_space<vmem>>, %arg11: memref<8x72xbf16, #tpu.memory_space<vmem>>, %arg12: memref<8x1xf32, #tpu.memory_space<vmem>>, %arg13: memref<8x8xbf16, #tpu.memory_space<vmem>>, %arg14: memref<8x1xf32, #tpu.memory_space<vmem>>, %arg15: memref<8x72xbf16, #tpu.memory_space<vmem>>, %arg16: memref<8x1xf32, #tpu.memory_space<vmem>>, %arg17: memref<128x384xbf16, #tpu.memory_space<vmem>>, %arg18: memref<384x128xbf16, #tpu.memory_space<vmem>>, %arg19: memref<1x8x384xf32, #tpu.memory_space<vmem>>, %arg20: memref<1x8x128xf32, #tpu.memory_space<vmem>>) attributes {dimension_semantics = [#tpu.dimension_semantics<parallel>], iteration_bounds = array<i64: 2>, scalar_prefetch = 0 : i64, scratch_operands = 0 : i64, tpu.core_type = #tpu.core_type<tc>, window_params = [{transform_indices = @transform_0, window_bounds = array<i64: 1, 8, 384>}, {transform_indices = @transform_1, window_bounds = array<i64: 1, 8, 128>}, {pipeline_mode = #tpu.pipeline_mode<synchronous>, transform_indices = @transform_2, window_bounds = array<i64: 1, 384>}, {pipeline_mode = #tpu.pipeline_mode<synchronous>, transform_indices = @transform_3, window_bounds = array<i64: 1, 128>}, {pipeline_mode = #tpu.pipeline_mode<synchronous>, transform_indices = @transform_4, window_bounds = array<i64: 8, 72>}, {pipeline_mode = #tpu.pipeline_mode<synchronous>, transform_indices = @transform_5, window_bounds = array<i64: 8, 1>}, {pipeline_mode = #tpu.pipeline_mode<synchronous>, transform_indices = @transform_6, window_bounds = array<i64: 8, 72>}, {pipeline_mode = #tpu.pipeline_mode<synchronous>, transform_indices = @transform_7, window_bounds = array<i64: 8, 1>}, {pipeline_mode = #tpu.pipeline_mode<synchronous>, transform_indices = @transform_8, window_bounds = array<i64: 8, 72>}, {pipeline_mode = #tpu.pipeline_mode<synchronous>, transform_indices = @transform_9, window_bounds = array<i64: 8, 1>}, {pipeline_mode = #tpu.pipeline_mode<synchronous>, transform_indices = @transform_10, window_bounds = array<i64: 8, 72>}, {pipeline_mode = #tpu.pipeline_mode<synchronous>, transform_indices = @transform_11, window_bounds = array<i64: 8, 1>}, {pipeline_mode = #tpu.pipeline_mode<synchronous>, transform_indices = @transform_12, window_bounds = array<i64: 8, 8>}, {pipeline_mode = #tpu.pipeline_mode<synchronous>, transform_indices = @transform_13, window_bounds = array<i64: 8, 1>}, {pipeline_mode = #tpu.pipeline_mode<synchronous>, transform_indices = @transform_14, window_bounds = array<i64: 8, 72>}, {pipeline_mode = #tpu.pipeline_mode<synchronous>, transform_indices = @transform_15, window_bounds = array<i64: 8, 1>}, {pipeline_mode = #tpu.pipeline_mode<synchronous>, transform_indices = @transform_16, window_bounds = array<i64: 128, 384>}, {pipeline_mode = #tpu.pipeline_mode<synchronous>, transform_indices = @transform_17, window_bounds = array<i64: 384, 128>}, {transform_indices = @transform_18, window_bounds = array<i64: 1, 8, 384>}, {transform_indices = @transform_19, window_bounds = array<i64: 1, 8, 128>}]} {
    %c0 = arith.constant 0 : index
    %c0_0 = arith.constant 0 : index
    %0 = vector.load %arg3[%c0, %c0_0] : memref<1x384xf32, #tpu.memory_space<vmem>>, vector<1x384xf32>
    %c0_1 = arith.constant 0 : index
    %c0_2 = arith.constant 0 : index
    %1 = vector.load %arg4[%c0_1, %c0_2] : memref<1x128xf32, #tpu.memory_space<vmem>>, vector<1x128xf32>
    %c0_3 = arith.constant 0 : index
    %c0_4 = arith.constant 0 : index
    %c0_5 = arith.constant 0 : index
    %2 = vector.load %arg1[%c0_3, %c0_4, %c0_5] : memref<1x8x384xf32, #tpu.memory_space<vmem>>, vector<1x8x384xf32>
    %3 = vector.shape_cast %2 : vector<1x8x384xf32> to vector<8x384xf32>
    %c0_6 = arith.constant 0 : index
    %c0_7 = arith.constant 0 : index
    %c0_8 = arith.constant 0 : index
    %4 = vector.load %arg2[%c0_6, %c0_7, %c0_8] : memref<1x8x128xf32, #tpu.memory_space<vmem>>, vector<1x8x128xf32>
    %5 = vector.shape_cast %4 : vector<1x8x128xf32> to vector<8x128xf32>
    %c0_9 = arith.constant 0 : index
    %c0_10 = arith.constant 0 : index
    %6 = vector.load %arg6[%c0_9, %c0_10] : memref<8x1xf32, #tpu.memory_space<vmem>>, vector<8x1xf32>
    %c19_i32 = arith.constant 19 : i32
    %7 = tpu.dynamic_rotate %3 by %c19_i32 dim 1 : vector<8x384xf32>, i32 -> vector<8x384xf32>
    %c18_i32 = arith.constant 18 : i32
    %8 = tpu.dynamic_rotate %3 by %c18_i32 dim 1 : vector<8x384xf32>, i32 -> vector<8x384xf32>
    %c17_i32 = arith.constant 17 : i32
    %9 = tpu.dynamic_rotate %3 by %c17_i32 dim 1 : vector<8x384xf32>, i32 -> vector<8x384xf32>
    %c1_i32 = arith.constant 1 : i32
    %10 = tpu.dynamic_rotate %3 by %c1_i32 dim 1 : vector<8x384xf32>, i32 -> vector<8x384xf32>
    %c383_i32 = arith.constant 383 : i32
    %11 = tpu.dynamic_rotate %3 by %c383_i32 dim 1 : vector<8x384xf32>, i32 -> vector<8x384xf32>
    %c367_i32 = arith.constant 367 : i32
    %12 = tpu.dynamic_rotate %3 by %c367_i32 dim 1 : vector<8x384xf32>, i32 -> vector<8x384xf32>
    %c366_i32 = arith.constant 366 : i32
    %13 = tpu.dynamic_rotate %3 by %c366_i32 dim 1 : vector<8x384xf32>, i32 -> vector<8x384xf32>
    %c365_i32 = arith.constant 365 : i32
    %14 = tpu.dynamic_rotate %3 by %c365_i32 dim 1 : vector<8x384xf32>, i32 -> vector<8x384xf32>
    %15 = tpu.concatenate %7, %8, %9, %10, %3, %11, %12, %13, %14 in 0 : vector<8x384xf32>, vector<8x384xf32>, vector<8x384xf32>, vector<8x384xf32>, vector<8x384xf32>, vector<8x384xf32>, vector<8x384xf32>, vector<8x384xf32>, vector<8x384xf32> -> vector<72x384xf32>
    %16 = arith.truncf %15 : vector<72x384xf32> to vector<72x384xbf16>
    %c0_11 = arith.constant 0 : index
    %c0_12 = arith.constant 0 : index
    %17 = vector.load %arg5[%c0_11, %c0_12] : memref<8x72xbf16, #tpu.memory_space<vmem>>, vector<8x72xbf16>
    %cst = arith.constant dense<0.000000e+00> : vector<8x384xf32>
    %18 = tpu.matmul %17, %16, %cst {dimension_numbers = #tpu.dot_dimension_numbers<[1], [0], [0], [1], [0, 0, 1, 1], [], []>} : vector<8x72xbf16>, vector<72x384xbf16>, vector<8x384xf32> -> vector<8x384xf32>
    %19 = vector.broadcast %6 : vector<8x1xf32> to vector<8x384xf32>
    %20 = arith.addf %18, %19 : vector<8x384xf32>
    %cst_13 = arith.constant 0.000000e+00 : f32
    %21 = vector.broadcast %cst_13 : f32 to vector<8x384xf32>
    %22 = arith.maximumf %20, %21 : vector<8x384xf32>
    %23 = vector.broadcast %0 : vector<1x384xf32> to vector<8x384xf32>
    %24 = arith.mulf %22, %23 : vector<8x384xf32>
    %c0_14 = arith.constant 0 : index
    %c0_15 = arith.constant 0 : index
    %25 = vector.load %arg8[%c0_14, %c0_15] : memref<8x1xf32, #tpu.memory_space<vmem>>, vector<8x1xf32>
    %c19_i32_16 = arith.constant 19 : i32
    %26 = tpu.dynamic_rotate %24 by %c19_i32_16 dim 1 : vector<8x384xf32>, i32 -> vector<8x384xf32>
    %c18_i32_17 = arith.constant 18 : i32
    %27 = tpu.dynamic_rotate %24 by %c18_i32_17 dim 1 : vector<8x384xf32>, i32 -> vector<8x384xf32>
    %c17_i32_18 = arith.constant 17 : i32
    %28 = tpu.dynamic_rotate %24 by %c17_i32_18 dim 1 : vector<8x384xf32>, i32 -> vector<8x384xf32>
    %c1_i32_19 = arith.constant 1 : i32
    %29 = tpu.dynamic_rotate %24 by %c1_i32_19 dim 1 : vector<8x384xf32>, i32 -> vector<8x384xf32>
    %c383_i32_20 = arith.constant 383 : i32
    %30 = tpu.dynamic_rotate %24 by %c383_i32_20 dim 1 : vector<8x384xf32>, i32 -> vector<8x384xf32>
    %c367_i32_21 = arith.constant 367 : i32
    %31 = tpu.dynamic_rotate %24 by %c367_i32_21 dim 1 : vector<8x384xf32>, i32 -> vector<8x384xf32>
    %c366_i32_22 = arith.constant 366 : i32
    %32 = tpu.dynamic_rotate %24 by %c366_i32_22 dim 1 : vector<8x384xf32>, i32 -> vector<8x384xf32>
    %c365_i32_23 = arith.constant 365 : i32
    %33 = tpu.dynamic_rotate %24 by %c365_i32_23 dim 1 : vector<8x384xf32>, i32 -> vector<8x384xf32>
    %34 = tpu.concatenate %26, %27, %28, %29, %24, %30, %31, %32, %33 in 0 : vector<8x384xf32>, vector<8x384xf32>, vector<8x384xf32>, vector<8x384xf32>, vector<8x384xf32>, vector<8x384xf32>, vector<8x384xf32>, vector<8x384xf32>, vector<8x384xf32> -> vector<72x384xf32>
    %35 = arith.truncf %34 : vector<72x384xf32> to vector<72x384xbf16>
    %c0_24 = arith.constant 0 : index
    %c0_25 = arith.constant 0 : index
    %36 = vector.load %arg7[%c0_24, %c0_25] : memref<8x72xbf16, #tpu.memory_space<vmem>>, vector<8x72xbf16>
    %cst_26 = arith.constant dense<0.000000e+00> : vector<8x384xf32>
    %37 = tpu.matmul %36, %35, %cst_26 {dimension_numbers = #tpu.dot_dimension_numbers<[1], [0], [0], [1], [0, 0, 1, 1], [], []>} : vector<8x72xbf16>, vector<72x384xbf16>, vector<8x384xf32> -> vector<8x384xf32>
    %38 = vector.broadcast %25 : vector<8x1xf32> to vector<8x384xf32>
    %39 = arith.addf %37, %38 : vector<8x384xf32>
    %40 = arith.addf %39, %3 : vector<8x384xf32>
    %cst_27 = arith.constant 0.000000e+00 : f32
    %41 = vector.broadcast %cst_27 : f32 to vector<8x384xf32>
    %42 = arith.maximumf %40, %41 : vector<8x384xf32>
    %43 = vector.broadcast %0 : vector<1x384xf32> to vector<8x384xf32>
    %44 = arith.mulf %42, %43 : vector<8x384xf32>
    %c0_28 = arith.constant 0 : index
    %c0_29 = arith.constant 0 : index
    %45 = vector.load %arg10[%c0_28, %c0_29] : memref<8x1xf32, #tpu.memory_space<vmem>>, vector<8x1xf32>
    %c11_i32 = arith.constant 11 : i32
    %46 = tpu.dynamic_rotate %5 by %c11_i32 dim 1 : vector<8x128xf32>, i32 -> vector<8x128xf32>
    %c10_i32 = arith.constant 10 : i32
    %47 = tpu.dynamic_rotate %5 by %c10_i32 dim 1 : vector<8x128xf32>, i32 -> vector<8x128xf32>
    %c9_i32 = arith.constant 9 : i32
    %48 = tpu.dynamic_rotate %5 by %c9_i32 dim 1 : vector<8x128xf32>, i32 -> vector<8x128xf32>
    %c1_i32_30 = arith.constant 1 : i32
    %49 = tpu.dynamic_rotate %5 by %c1_i32_30 dim 1 : vector<8x128xf32>, i32 -> vector<8x128xf32>
    %c127_i32 = arith.constant 127 : i32
    %50 = tpu.dynamic_rotate %5 by %c127_i32 dim 1 : vector<8x128xf32>, i32 -> vector<8x128xf32>
    %c119_i32 = arith.constant 119 : i32
    %51 = tpu.dynamic_rotate %5 by %c119_i32 dim 1 : vector<8x128xf32>, i32 -> vector<8x128xf32>
    %c118_i32 = arith.constant 118 : i32
    %52 = tpu.dynamic_rotate %5 by %c118_i32 dim 1 : vector<8x128xf32>, i32 -> vector<8x128xf32>
    %c117_i32 = arith.constant 117 : i32
    %53 = tpu.dynamic_rotate %5 by %c117_i32 dim 1 : vector<8x128xf32>, i32 -> vector<8x128xf32>
    %54 = tpu.concatenate %46, %47, %48, %49, %5, %50, %51, %52, %53 in 0 : vector<8x128xf32>, vector<8x128xf32>, vector<8x128xf32>, vector<8x128xf32>, vector<8x128xf32>, vector<8x128xf32>, vector<8x128xf32>, vector<8x128xf32>, vector<8x128xf32> -> vector<72x128xf32>
    %55 = arith.truncf %54 : vector<72x128xf32> to vector<72x128xbf16>
    %c0_31 = arith.constant 0 : index
    %c0_32 = arith.constant 0 : index
    %56 = vector.load %arg9[%c0_31, %c0_32] : memref<8x72xbf16, #tpu.memory_space<vmem>>, vector<8x72xbf16>
    %cst_33 = arith.constant dense<0.000000e+00> : vector<8x128xf32>
    %57 = tpu.matmul %56, %55, %cst_33 {dimension_numbers = #tpu.dot_dimension_numbers<[1], [0], [0], [1], [0, 0, 1, 1], [], []>} : vector<8x72xbf16>, vector<72x128xbf16>, vector<8x128xf32> -> vector<8x128xf32>
    %58 = vector.broadcast %45 : vector<8x1xf32> to vector<8x128xf32>
    %59 = arith.addf %57, %58 : vector<8x128xf32>
    %cst_34 = arith.constant 0.000000e+00 : f32
    %60 = vector.broadcast %cst_34 : f32 to vector<8x128xf32>
    %61 = arith.maximumf %59, %60 : vector<8x128xf32>
    %62 = vector.broadcast %1 : vector<1x128xf32> to vector<8x128xf32>
    %63 = arith.mulf %61, %62 : vector<8x128xf32>
    %c0_35 = arith.constant 0 : index
    %c0_36 = arith.constant 0 : index
    %64 = vector.load %arg12[%c0_35, %c0_36] : memref<8x1xf32, #tpu.memory_space<vmem>>, vector<8x1xf32>
    %c11_i32_37 = arith.constant 11 : i32
    %65 = tpu.dynamic_rotate %63 by %c11_i32_37 dim 1 : vector<8x128xf32>, i32 -> vector<8x128xf32>
    %c10_i32_38 = arith.constant 10 : i32
    %66 = tpu.dynamic_rotate %63 by %c10_i32_38 dim 1 : vector<8x128xf32>, i32 -> vector<8x128xf32>
    %c9_i32_39 = arith.constant 9 : i32
    %67 = tpu.dynamic_rotate %63 by %c9_i32_39 dim 1 : vector<8x128xf32>, i32 -> vector<8x128xf32>
    %c1_i32_40 = arith.constant 1 : i32
    %68 = tpu.dynamic_rotate %63 by %c1_i32_40 dim 1 : vector<8x128xf32>, i32 -> vector<8x128xf32>
    %c127_i32_41 = arith.constant 127 : i32
    %69 = tpu.dynamic_rotate %63 by %c127_i32_41 dim 1 : vector<8x128xf32>, i32 -> vector<8x128xf32>
    %c119_i32_42 = arith.constant 119 : i32
    %70 = tpu.dynamic_rotate %63 by %c119_i32_42 dim 1 : vector<8x128xf32>, i32 -> vector<8x128xf32>
    %c118_i32_43 = arith.constant 118 : i32
    %71 = tpu.dynamic_rotate %63 by %c118_i32_43 dim 1 : vector<8x128xf32>, i32 -> vector<8x128xf32>
    %c117_i32_44 = arith.constant 117 : i32
    %72 = tpu.dynamic_rotate %63 by %c117_i32_44 dim 1 : vector<8x128xf32>, i32 -> vector<8x128xf32>
    %73 = tpu.concatenate %65, %66, %67, %68, %63, %69, %70, %71, %72 in 0 : vector<8x128xf32>, vector<8x128xf32>, vector<8x128xf32>, vector<8x128xf32>, vector<8x128xf32>, vector<8x128xf32>, vector<8x128xf32>, vector<8x128xf32>, vector<8x128xf32> -> vector<72x128xf32>
    %74 = arith.truncf %73 : vector<72x128xf32> to vector<72x128xbf16>
    %c0_45 = arith.constant 0 : index
    %c0_46 = arith.constant 0 : index
    %75 = vector.load %arg11[%c0_45, %c0_46] : memref<8x72xbf16, #tpu.memory_space<vmem>>, vector<8x72xbf16>
    %cst_47 = arith.constant dense<0.000000e+00> : vector<8x128xf32>
    %76 = tpu.matmul %75, %74, %cst_47 {dimension_numbers = #tpu.dot_dimension_numbers<[1], [0], [0], [1], [0, 0, 1, 1], [], []>} : vector<8x72xbf16>, vector<72x128xbf16>, vector<8x128xf32> -> vector<8x128xf32>
    %77 = vector.broadcast %64 : vector<8x1xf32> to vector<8x128xf32>
    %78 = arith.addf %76, %77 : vector<8x128xf32>
    %79 = arith.addf %78, %5 : vector<8x128xf32>
    %cst_48 = arith.constant 0.000000e+00 : f32
    %80 = vector.broadcast %cst_48 : f32 to vector<8x128xf32>
    %81 = arith.maximumf %79, %80 : vector<8x128xf32>
    %c0_49 = arith.constant 0 : index
    %c0_50 = arith.constant 0 : index
    %82 = vector.load %arg13[%c0_49, %c0_50] : memref<8x8xbf16, #tpu.memory_space<vmem>>, vector<8x8xbf16>
    %83 = arith.truncf %81 : vector<8x128xf32> to vector<8x128xbf16>
    %cst_51 = arith.constant dense<0.000000e+00> : vector<8x128xf32>
    %84 = tpu.matmul %82, %83, %cst_51 {dimension_numbers = #tpu.dot_dimension_numbers<[1], [0], [0], [1], [0, 0, 1, 1], [], []>} : vector<8x8xbf16>, vector<8x128xbf16>, vector<8x128xf32> -> vector<8x128xf32>
    %c0_52 = arith.constant 0 : index
    %c0_53 = arith.constant 0 : index
    %85 = vector.load %arg14[%c0_52, %c0_53] : memref<8x1xf32, #tpu.memory_space<vmem>>, vector<8x1xf32>
    %86 = vector.broadcast %85 : vector<8x1xf32> to vector<8x128xf32>
    %87 = arith.addf %84, %86 : vector<8x128xf32>
    %88 = arith.truncf %87 : vector<8x128xf32> to vector<8x128xbf16>
    %c0_54 = arith.constant 0 : index
    %c0_55 = arith.constant 0 : index
    %89 = vector.load %arg17[%c0_54, %c0_55] : memref<128x384xbf16, #tpu.memory_space<vmem>>, vector<128x384xbf16>
    %cst_56 = arith.constant dense<0.000000e+00> : vector<8x384xf32>
    %90 = tpu.matmul %88, %89, %cst_56 {dimension_numbers = #tpu.dot_dimension_numbers<[1], [0], [0], [1], [0, 0, 1, 1], [], []>} : vector<8x128xbf16>, vector<128x384xbf16>, vector<8x384xf32> -> vector<8x384xf32>
    %91 = arith.addf %44, %90 : vector<8x384xf32>
    %cst_57 = arith.constant 0.000000e+00 : f32
    %92 = vector.broadcast %cst_57 : f32 to vector<8x384xf32>
    %93 = arith.maximumf %91, %92 : vector<8x384xf32>
    %c0_58 = arith.constant 0 : index
    %c0_59 = arith.constant 0 : index
    %c0_60 = arith.constant 0 : index
    %94 = vector.load %arg19[%c0_58, %c0_59, %c0_60] : memref<1x8x384xf32, #tpu.memory_space<vmem>>, vector<1x8x384xf32>
    %95 = vector.shape_cast %94 : vector<1x8x384xf32> to vector<8x384xf32>
    %96 = vector.shape_cast %93 : vector<8x384xf32> to vector<1x8x384xf32>
    tpu.vector_store %arg19[%c0_58, %c0_59, %c0_60], %96 {strides = array<i32>} : memref<1x8x384xf32, #tpu.memory_space<vmem>>, vector<1x8x384xf32>,
    %c19_i32_61 = arith.constant 19 : i32
    %97 = tpu.dynamic_rotate %44 by %c19_i32_61 dim 1 : vector<8x384xf32>, i32 -> vector<8x384xf32>
    %c18_i32_62 = arith.constant 18 : i32
    %98 = tpu.dynamic_rotate %44 by %c18_i32_62 dim 1 : vector<8x384xf32>, i32 -> vector<8x384xf32>
    %c17_i32_63 = arith.constant 17 : i32
    %99 = tpu.dynamic_rotate %44 by %c17_i32_63 dim 1 : vector<8x384xf32>, i32 -> vector<8x384xf32>
    %c1_i32_64 = arith.constant 1 : i32
    %100 = tpu.dynamic_rotate %44 by %c1_i32_64 dim 1 : vector<8x384xf32>, i32 -> vector<8x384xf32>
    %c383_i32_65 = arith.constant 383 : i32
    %101 = tpu.dynamic_rotate %44 by %c383_i32_65 dim 1 : vector<8x384xf32>, i32 -> vector<8x384xf32>
    %c367_i32_66 = arith.constant 367 : i32
    %102 = tpu.dynamic_rotate %44 by %c367_i32_66 dim 1 : vector<8x384xf32>, i32 -> vector<8x384xf32>
    %c366_i32_67 = arith.constant 366 : i32
    %103 = tpu.dynamic_rotate %44 by %c366_i32_67 dim 1 : vector<8x384xf32>, i32 -> vector<8x384xf32>
    %c365_i32_68 = arith.constant 365 : i32
    %104 = tpu.dynamic_rotate %44 by %c365_i32_68 dim 1 : vector<8x384xf32>, i32 -> vector<8x384xf32>
    %105 = tpu.concatenate %97, %98, %99, %100, %44, %101, %102, %103, %104 in 0 : vector<8x384xf32>, vector<8x384xf32>, vector<8x384xf32>, vector<8x384xf32>, vector<8x384xf32>, vector<8x384xf32>, vector<8x384xf32>, vector<8x384xf32>, vector<8x384xf32> -> vector<72x384xf32>
    %106 = arith.truncf %105 : vector<72x384xf32> to vector<72x384xbf16>
    %c0_69 = arith.constant 0 : index
    %c0_70 = arith.constant 0 : index
    %107 = vector.load %arg15[%c0_69, %c0_70] : memref<8x72xbf16, #tpu.memory_space<vmem>>, vector<8x72xbf16>
    %cst_71 = arith.constant dense<0.000000e+00> : vector<8x384xf32>
    %108 = tpu.matmul %107, %106, %cst_71 {dimension_numbers = #tpu.dot_dimension_numbers<[1], [0], [0], [1], [0, 0, 1, 1], [], []>} : vector<8x72xbf16>, vector<72x384xbf16>, vector<8x384xf32> -> vector<8x384xf32>
    %109 = arith.truncf %108 : vector<8x384xf32> to vector<8x384xbf16>
    %c0_72 = arith.constant 0 : index
    %c0_73 = arith.constant 0 : index
    %110 = vector.load %arg18[%c0_72, %c0_73] : memref<384x128xbf16, #tpu.memory_space<vmem>>, vector<384x128xbf16>
    %cst_74 = arith.constant dense<0.000000e+00> : vector<8x128xf32>
    %111 = tpu.matmul %109, %110, %cst_74 {dimension_numbers = #tpu.dot_dimension_numbers<[1], [0], [0], [1], [0, 0, 1, 1], [], []>} : vector<8x384xbf16>, vector<384x128xbf16>, vector<8x128xf32> -> vector<8x128xf32>
    %112 = arith.addf %81, %111 : vector<8x128xf32>
    %c0_75 = arith.constant 0 : index
    %c0_76 = arith.constant 0 : index
    %113 = vector.load %arg16[%c0_75, %c0_76] : memref<8x1xf32, #tpu.memory_space<vmem>>, vector<8x1xf32>
    %114 = vector.broadcast %113 : vector<8x1xf32> to vector<8x128xf32>
    %115 = arith.addf %112, %114 : vector<8x128xf32>
    %cst_77 = arith.constant 0.000000e+00 : f32
    %116 = vector.broadcast %cst_77 : f32 to vector<8x128xf32>
    %117 = arith.maximumf %115, %116 : vector<8x128xf32>
    %118 = vector.broadcast %1 : vector<1x128xf32> to vector<8x128xf32>
    %119 = arith.mulf %117, %118 : vector<8x128xf32>
    %c0_78 = arith.constant 0 : index
    %c0_79 = arith.constant 0 : index
    %c0_80 = arith.constant 0 : index
    %120 = vector.load %arg20[%c0_78, %c0_79, %c0_80] : memref<1x8x128xf32, #tpu.memory_space<vmem>>, vector<1x8x128xf32>
    %121 = vector.shape_cast %120 : vector<1x8x128xf32> to vector<8x128xf32>
    %122 = vector.shape_cast %119 : vector<8x128xf32> to vector<1x8x128xf32>
    tpu.vector_store %arg20[%c0_78, %c0_79, %c0_80], %122 {strides = array<i32>} : memref<1x8x128xf32, #tpu.memory_space<vmem>>, vector<1x8x128xf32>,
    return
  }
  func.func @transform_0(%arg0: i32) -> (i32, i32, i32) {
    %c0_i32 = arith.constant 0 : i32
    %c0_i32_0 = arith.constant 0 : i32
    %c0_i32_1 = arith.constant 0 : i32
    return %arg0, %c0_i32, %c0_i32_0 : i32, i32, i32
  }
  func.func @transform_1(%arg0: i32) -> (i32, i32, i32) {
    %c0_i32 = arith.constant 0 : i32
    %c0_i32_0 = arith.constant 0 : i32
    %c0_i32_1 = arith.constant 0 : i32
    return %arg0, %c0_i32, %c0_i32_0 : i32, i32, i32
  }
  func.func @transform_2(%arg0: i32) -> (i32, i32) {
    %c0_i32 = arith.constant 0 : i32
    %c0_i32_0 = arith.constant 0 : i32
    %c0_i32_1 = arith.constant 0 : i32
    return %c0_i32, %c0_i32_0 : i32, i32
  }
  func.func @transform_3(%arg0: i32) -> (i32, i32) {
    %c0_i32 = arith.constant 0 : i32
    %c0_i32_0 = arith.constant 0 : i32
    %c0_i32_1 = arith.constant 0 : i32
    return %c0_i32, %c0_i32_0 : i32, i32
  }
  func.func @transform_4(%arg0: i32) -> (i32, i32) {
    %c0_i32 = arith.constant 0 : i32
    %c0_i32_0 = arith.constant 0 : i32
    %c0_i32_1 = arith.constant 0 : i32
    return %c0_i32, %c0_i32_0 : i32, i32
  }
  func.func @transform_5(%arg0: i32) -> (i32, i32) {
    %c0_i32 = arith.constant 0 : i32
    %c0_i32_0 = arith.constant 0 : i32
    %c0_i32_1 = arith.constant 0 : i32
    return %c0_i32, %c0_i32_0 : i32, i32
  }
  func.func @transform_6(%arg0: i32) -> (i32, i32) {
    %c0_i32 = arith.constant 0 : i32
    %c0_i32_0 = arith.constant 0 : i32
    %c0_i32_1 = arith.constant 0 : i32
    return %c0_i32, %c0_i32_0 : i32, i32
  }
  func.func @transform_7(%arg0: i32) -> (i32, i32) {
    %c0_i32 = arith.constant 0 : i32
    %c0_i32_0 = arith.constant 0 : i32
    %c0_i32_1 = arith.constant 0 : i32
    return %c0_i32, %c0_i32_0 : i32, i32
  }
  func.func @transform_8(%arg0: i32) -> (i32, i32) {
    %c0_i32 = arith.constant 0 : i32
    %c0_i32_0 = arith.constant 0 : i32
    %c0_i32_1 = arith.constant 0 : i32
    return %c0_i32, %c0_i32_0 : i32, i32
  }
  func.func @transform_9(%arg0: i32) -> (i32, i32) {
    %c0_i32 = arith.constant 0 : i32
    %c0_i32_0 = arith.constant 0 : i32
    %c0_i32_1 = arith.constant 0 : i32
    return %c0_i32, %c0_i32_0 : i32, i32
  }
  func.func @transform_10(%arg0: i32) -> (i32, i32) {
    %c0_i32 = arith.constant 0 : i32
    %c0_i32_0 = arith.constant 0 : i32
    %c0_i32_1 = arith.constant 0 : i32
    return %c0_i32, %c0_i32_0 : i32, i32
  }
  func.func @transform_11(%arg0: i32) -> (i32, i32) {
    %c0_i32 = arith.constant 0 : i32
    %c0_i32_0 = arith.constant 0 : i32
    %c0_i32_1 = arith.constant 0 : i32
    return %c0_i32, %c0_i32_0 : i32, i32
  }
  func.func @transform_12(%arg0: i32) -> (i32, i32) {
    %c0_i32 = arith.constant 0 : i32
    %c0_i32_0 = arith.constant 0 : i32
    %c0_i32_1 = arith.constant 0 : i32
    return %c0_i32, %c0_i32_0 : i32, i32
  }
  func.func @transform_13(%arg0: i32) -> (i32, i32) {
    %c0_i32 = arith.constant 0 : i32
    %c0_i32_0 = arith.constant 0 : i32
    %c0_i32_1 = arith.constant 0 : i32
    return %c0_i32, %c0_i32_0 : i32, i32
  }
  func.func @transform_14(%arg0: i32) -> (i32, i32) {
    %c0_i32 = arith.constant 0 : i32
    %c0_i32_0 = arith.constant 0 : i32
    %c0_i32_1 = arith.constant 0 : i32
    return %c0_i32, %c0_i32_0 : i32, i32
  }
  func.func @transform_15(%arg0: i32) -> (i32, i32) {
    %c0_i32 = arith.constant 0 : i32
    %c0_i32_0 = arith.constant 0 : i32
    %c0_i32_1 = arith.constant 0 : i32
    return %c0_i32, %c0_i32_0 : i32, i32
  }
  func.func @transform_16(%arg0: i32) -> (i32, i32) {
    %c0_i32 = arith.constant 0 : i32
    %c0_i32_0 = arith.constant 0 : i32
    %c0_i32_1 = arith.constant 0 : i32
    return %c0_i32, %c0_i32_0 : i32, i32
  }
  func.func @transform_17(%arg0: i32) -> (i32, i32) {
    %c0_i32 = arith.constant 0 : i32
    %c0_i32_0 = arith.constant 0 : i32
    %c0_i32_1 = arith.constant 0 : i32
    return %c0_i32, %c0_i32_0 : i32, i32
  }
  func.func @transform_18(%arg0: i32) -> (i32, i32, i32) {
    %c0_i32 = arith.constant 0 : i32
    %c0_i32_0 = arith.constant 0 : i32
    %c0_i32_1 = arith.constant 0 : i32
    return %arg0, %c0_i32, %c0_i32_0 : i32, i32, i32
  }
  func.func @transform_19(%arg0: i32) -> (i32, i32, i32) {
    %c0_i32 = arith.constant 0 : i32
    %c0_i32_0 = arith.constant 0 : i32
    %c0_i32_1 = arith.constant 0 : i32
    return %arg0, %c0_i32, %c0_i32_0 : i32, i32, i32
  }
}

</mosaic_0001>

<llo_original>
// kernel: hrm_forward_pallas.1
$region0: #{hrm_forward_pallas.1}
  #allocation0 [shape = 'u32[]', space=smem, size = 0x4, offset = 0x4, fixed_abs, tag = 'smem constant byte address 0x4 - core index']
  #allocation1 [shape = 'u32[144,128]{1,0:T(1,128)}', space=vmem, size = 0x12000, scoped, tag = 'internal scratch']
  %s0 = inlined_call_operand.vmem [shape: f32[2,8,384], index: 0, kind: input, shape index: {}]
  %s1 = inlined_call_operand.vmem [shape: f32[2,8,128], index: 1, kind: input, shape index: {}]
  %s2 = inlined_call_operand.vmem [shape: f32[1,384], index: 2, kind: input, shape index: {}]
  %s3 = inlined_call_operand.vmem [shape: f32[1,128], index: 3, kind: input, shape index: {}]
  %s4 = inlined_call_operand.vmem [shape: bf16[8,72], index: 4, kind: input, shape index: {}]
  %s5 = inlined_call_operand.vmem [shape: f32[8,1], index: 5, kind: input, shape index: {}]
  %s6 = inlined_call_operand.vmem [shape: bf16[8,72], index: 6, kind: input, shape index: {}]
  %s7 = inlined_call_operand.vmem [shape: f32[8,1], index: 7, kind: input, shape index: {}]
  %s8 = inlined_call_operand.vmem [shape: bf16[8,72], index: 8, kind: input, shape index: {}]
  %s9 = inlined_call_operand.vmem [shape: f32[8,1], index: 9, kind: input, shape index: {}]
  %s10 = inlined_call_operand.vmem [shape: bf16[8,72], index: 10, kind: input, shape index: {}]
  %s11 = inlined_call_operand.vmem [shape: f32[8,1], index: 11, kind: input, shape index: {}]
  %s12 = inlined_call_operand.vmem [shape: bf16[8,8], index: 12, kind: input, shape index: {}]
  %s13 = inlined_call_operand.vmem [shape: f32[8,1], index: 13, kind: input, shape index: {}]
  %s14 = inlined_call_operand.vmem [shape: bf16[8,72], index: 14, kind: input, shape index: {}]
  %s15 = inlined_call_operand.vmem [shape: f32[8,1], index: 15, kind: input, shape index: {}]
  %s16 = inlined_call_operand.vmem [shape: bf16[128,384], index: 16, kind: input, shape index: {}]
  %s17 = inlined_call_operand.vmem [shape: bf16[384,128], index: 17, kind: input, shape index: {}]
  %s18 = inlined_call_operand.vmem [shape: f32[2,8,384], index: 18, kind: output, shape index: {0}]
  %s19 = inlined_call_operand.vmem [shape: f32[2,8,128], index: 19, kind: output, shape index: {1}]
  %20 = xla_tuple %s18, %s19
  %s21 = sld [smem:[#allocation0]]
  $region113: #{hrm_forward_pallas.1} parent=0
    _
  %s23 = ssub.s32 1, %s21
  %s24 = scalar_select 0, %s23, %s21
  loop: start=0, step=1, limit=4
  $region2: #{hrm_forward_pallas.1} parent=0 // loop_pre_header
    _
  $region3: #{hrm_forward_pallas.1} parent=0 // loop_header
    %s26 = sphi 0, %s30
    %p27 = scmp.ge.s32.totalorder %s26, 4
    %s36 = sphi 0, %s38
    %s39 = sphi 0, %s36
    %s40 = sphi 0, %s39
    %s56 = sphi 0, %s40
    %s62 = sphi 0, %s64
    %s65 = sphi 0, %s62
    %s66 = sphi 0, %s65
    %s82 = sphi 0, %s66
    %s86 = sphi 0, %s86
    %s88 = sphi 0, %s86
    %s89 = sphi 0, %s88
    %s103 = sphi 0, %s89
    %s107 = sphi 0, %s107
    %s109 = sphi 0, %s107
    %s110 = sphi 0, %s109
    %s124 = sphi 0, %s110
    %s128 = sphi 0, %s128
    %s130 = sphi 0, %s128
    %s131 = sphi 0, %s130
    %s145 = sphi 0, %s131
    %s149 = sphi 0, %s149
    %s151 = sphi 0, %s149
    %s152 = sphi 0, %s151
    %s166 = sphi 0, %s152
    %s170 = sphi 0, %s170
    %s172 = sphi 0, %s170
    %s173 = sphi 0, %s172
    %s187 = sphi 0, %s173
    %s191 = sphi 0, %s191
    %s193 = sphi 0, %s191
    %s194 = sphi 0, %s193
    %s208 = sphi 0, %s194
    %s212 = sphi 0, %s212
    %s214 = sphi 0, %s212
    %s215 = sphi 0, %s214
    %s229 = sphi 0, %s215
    %s233 = sphi 0, %s233
    %s235 = sphi 0, %s233
    %s236 = sphi 0, %s235
    %s250 = sphi 0, %s236
    %s254 = sphi 0, %s254
    %s256 = sphi 0, %s254
    %s257 = sphi 0, %s256
    %s271 = sphi 0, %s257
    %s275 = sphi 0, %s275
    %s277 = sphi 0, %s275
    %s278 = sphi 0, %s277
    %s292 = sphi 0, %s278
    %s296 = sphi 0, %s296
    %s298 = sphi 0, %s296
    %s299 = sphi 0, %s298
    %s313 = sphi 0, %s299
    %s317 = sphi 0, %s317
    %s319 = sphi 0, %s317
    %s320 = sphi 0, %s319
    %s334 = sphi 0, %s320
    %s338 = sphi 0, %s338
    %s340 = sphi 0, %s338
    %s341 = sphi 0, %s340
    %s355 = sphi 0, %s341
    %s359 = sphi 0, %s359
    %s361 = sphi 0, %s359
    %s362 = sphi 0, %s361
    %s376 = sphi 0, %s362
    %s380 = sphi 0, %s380
    %s382 = sphi 0, %s380
    %s383 = sphi 0, %s382
    %s397 = sphi 0, %s383
    %s401 = sphi 0, %s401
    %s403 = sphi 0, %s401
    %s404 = sphi 0, %s403
    %s418 = sphi 0, %s404
    %s424 = sphi 0, %s426
    %s427 = sphi 0, %s424
    %s428 = sphi 0, %s427
    %s444 = sphi 0, %s428
    %s450 = sphi 0, %s452
    %s453 = sphi 0, %s450
    %s454 = sphi 0, %s453
    %s470 = sphi 0, %s454
  $region4: #{hrm_forward_pallas.1} parent=0 // loop_header_branch
    %29 = sbr.rel (%p27) target = $region8
  $region5: #{hrm_forward_pallas.1} parent=0 // loop_body
    %s31 = ssub.s32 %s26, 1
    %s32 = ssub.s32 %s26, 2
    %s33 = sadd.s32 %s26, 1
    %s34 = ssub.s32 %s26, %s33
    %p35 = scmp.eq.s32.totalorder %s34, 0
    %s37 = sadd.s32 %s36, 1
    %s38 = scalar_select %p35, %s36, %s37
    %p41 = pneg %p35
    %p42 = scmp.eq.s32.totalorder %s26, 1
    %p43 = por %p41, %p42
    %p44 = scmp.ne.s32.totalorder %s36, %s39
    %p45 = scmp.eq.s32.totalorder %s26, 0
    %p46 = por %p44, %p45
    %p47 = scmp.ne.s32.totalorder %s36, %s39
    %p48 = scmp.eq.s32.totalorder %s31, 1
    %p49 = por %p47, %p48
    %p50 = scmp.ne.s32.totalorder %s39, %s40
    %p51 = scmp.eq.s32.totalorder %s31, 0
    %p52 = por %p50, %p51
    %p53 = scmp.ne.s32.totalorder %s39, %s40
    %p54 = scmp.eq.s32.totalorder %s32, 1
    %p55 = por %p53, %p54
    %p57 = scmp.ne.s32.totalorder %s40, %s56
    %p58 = scmp.eq.s32.totalorder %s32, 0
    %p59 = por %p57, %p58
    %s60 = ssub.s32 %s26, %s33
    %p61 = scmp.eq.s32.totalorder %s60, 0
    %s63 = sadd.s32 %s62, 1
    %s64 = scalar_select %p61, %s62, %s63
    %p67 = pneg %p61
    %p68 = scmp.eq.s32.totalorder %s26, 1
    %p69 = por %p67, %p68
    %p70 = scmp.ne.s32.totalorder %s62, %s65
    %p71 = scmp.eq.s32.totalorder %s26, 0
    %p72 = por %p70, %p71
    %p73 = scmp.ne.s32.totalorder %s62, %s65
    %p74 = scmp.eq.s32.totalorder %s31, 1
    %p75 = por %p73, %p74
    %p76 = scmp.ne.s32.totalorder %s65, %s66
    %p77 = scmp.eq.s32.totalorder %s31, 0
    %p78 = por %p76, %p77
    %p79 = scmp.ne.s32.totalorder %s65, %s66
    %p80 = scmp.eq.s32.totalorder %s32, 1
    %p81 = por %p79, %p80
    %p83 = scmp.ne.s32.totalorder %s66, %s82
    %p84 = scmp.eq.s32.totalorder %s32, 0
    %p85 = por %p83, %p84
    %s87 = sadd.s32 %s86, 1
    %p90 = scmp.eq.s32.totalorder %s26, 1
    %p91 = scmp.ne.s32.totalorder %s86, %s88
    %p92 = scmp.eq.s32.totalorder %s26, 0
    %p93 = por %p91, %p92
    %p94 = scmp.ne.s32.totalorder %s86, %s88
    %p95 = scmp.eq.s32.totalorder %s31, 1
    %p96 = por %p94, %p95
    %p97 = scmp.ne.s32.totalorder %s88, %s89
    %p98 = scmp.eq.s32.totalorder %s31, 0
    %p99 = por %p97, %p98
    %p100 = scmp.ne.s32.totalorder %s88, %s89
    %p101 = scmp.eq.s32.totalorder %s32, 1
    %p102 = por %p100, %p101
    %p104 = scmp.ne.s32.totalorder %s89, %s103
    %p105 = scmp.eq.s32.totalorder %s32, 0
    %p106 = por %p104, %p105
    %s108 = sadd.s32 %s107, 1
    %p111 = scmp.eq.s32.totalorder %s26, 1
    %p112 = scmp.ne.s32.totalorder %s107, %s109
    %p113 = scmp.eq.s32.totalorder %s26, 0
    %p114 = por %p112, %p113
    %p115 = scmp.ne.s32.totalorder %s107, %s109
    %p116 = scmp.eq.s32.totalorder %s31, 1
    %p117 = por %p115, %p116
    %p118 = scmp.ne.s32.totalorder %s109, %s110
    %p119 = scmp.eq.s32.totalorder %s31, 0
    %p120 = por %p118, %p119
    %p121 = scmp.ne.s32.totalorder %s109, %s110
    %p122 = scmp.eq.s32.totalorder %s32, 1
    %p123 = por %p121, %p122
    %p125 = scmp.ne.s32.totalorder %s110, %s124
    %p126 = scmp.eq.s32.totalorder %s32, 0
    %p127 = por %p125, %p126
    %s129 = sadd.s32 %s128, 1
    %p132 = scmp.eq.s32.totalorder %s26, 1
    %p133 = scmp.ne.s32.totalorder %s128, %s130
    %p134 = scmp.eq.s32.totalorder %s26, 0
    %p135 = por %p133, %p134
    %p136 = scmp.ne.s32.totalorder %s128, %s130
    %p137 = scmp.eq.s32.totalorder %s31, 1
    %p138 = por %p136, %p137
    %p139 = scmp.ne.s32.totalorder %s130, %s131
    %p140 = scmp.eq.s32.totalorder %s31, 0
    %p141 = por %p139, %p140
    %p142 = scmp.ne.s32.totalorder %s130, %s131
    %p143 = scmp.eq.s32.totalorder %s32, 1
    %p144 = por %p142, %p143
    %p146 = scmp.ne.s32.totalorder %s131, %s145
    %p147 = scmp.eq.s32.totalorder %s32, 0
    %p148 = por %p146, %p147
    %s150 = sadd.s32 %s149, 1
    %p153 = scmp.eq.s32.totalorder %s26, 1
    %p154 = scmp.ne.s32.totalorder %s149, %s151
    %p155 = scmp.eq.s32.totalorder %s26, 0
    %p156 = por %p154, %p155
    %p157 = scmp.ne.s32.totalorder %s149, %s151
    %p158 = scmp.eq.s32.totalorder %s31, 1
    %p159 = por %p157, %p158
    %p160 = scmp.ne.s32.totalorder %s151, %s152
    %p161 = scmp.eq.s32.totalorder %s31, 0
    %p162 = por %p160, %p161
    %p163 = scmp.ne.s32.totalorder %s151, %s152
    %p164 = scmp.eq.s32.totalorder %s32, 1
    %p165 = por %p163, %p164
    %p167 = scmp.ne.s32.totalorder %s152, %s166
    %p168 = scmp.eq.s32.totalorder %s32, 0
    %p169 = por %p167, %p168
    %s171 = sadd.s32 %s170, 1
    %p174 = scmp.eq.s32.totalorder %s26, 1
    %p175 = scmp.ne.s32.totalorder %s170, %s172
    %p176 = scmp.eq.s32.totalorder %s26, 0
    %p177 = por %p175, %p176
    %p178 = scmp.ne.s32.totalorder %s170, %s172
    %p179 = scmp.eq.s32.totalorder %s31, 1
    %p180 = por %p178, %p179
    %p181 = scmp.ne.s32.totalorder %s172, %s173
    %p182 = scmp.eq.s32.totalorder %s31, 0
    %p183 = por %p181, %p182
    %p184 = scmp.ne.s32.totalorder %s172, %s173
    %p185 = scmp.eq.s32.totalorder %s32, 1
    %p186 = por %p184, %p185
    %p188 = scmp.ne.s32.totalorder %s173, %s187
    %p189 = scmp.eq.s32.totalorder %s32, 0
    %p190 = por %p188, %p189
    %s192 = sadd.s32 %s191, 1
    %p195 = scmp.eq.s32.totalorder %s26, 1
    %p196 = scmp.ne.s32.totalorder %s191, %s193
    %p197 = scmp.eq.s32.totalorder %s26, 0
    %p198 = por %p196, %p197
    %p199 = scmp.ne.s32.totalorder %s191, %s193
    %p200 = scmp.eq.s32.totalorder %s31, 1
    %p201 = por %p199, %p200
    %p202 = scmp.ne.s32.totalorder %s193, %s194
    %p203 = scmp.eq.s32.totalorder %s31, 0
    %p204 = por %p202, %p203
    %p205 = scmp.ne.s32.totalorder %s193, %s194
    %p206 = scmp.eq.s32.totalorder %s32, 1
    %p207 = por %p205, %p206
    %p209 = scmp.ne.s32.totalorder %s194, %s208
    %p210 = scmp.eq.s32.totalorder %s32, 0
    %p211 = por %p209, %p210
    %s213 = sadd.s32 %s212, 1
    %p216 = scmp.eq.s32.totalorder %s26, 1
    %p217 = scmp.ne.s32.totalorder %s212, %s214
    %p218 = scmp.eq.s32.totalorder %s26, 0
    %p219 = por %p217, %p218
    %p220 = scmp.ne.s32.totalorder %s212, %s214
    %p221 = scmp.eq.s32.totalorder %s31, 1
    %p222 = por %p220, %p221
    %p223 = scmp.ne.s32.totalorder %s214, %s215
    %p224 = scmp.eq.s32.totalorder %s31, 0
    %p225 = por %p223, %p224
    %p226 = scmp.ne.s32.totalorder %s214, %s215
    %p227 = scmp.eq.s32.totalorder %s32, 1
    %p228 = por %p226, %p227
    %p230 = scmp.ne.s32.totalorder %s215, %s229
    %p231 = scmp.eq.s32.totalorder %s32, 0
    %p232 = por %p230, %p231
    %s234 = sadd.s32 %s233, 1
    %p237 = scmp.eq.s32.totalorder %s26, 1
    %p238 = scmp.ne.s32.totalorder %s233, %s235
    %p239 = scmp.eq.s32.totalorder %s26, 0
    %p240 = por %p238, %p239
    %p241 = scmp.ne.s32.totalorder %s233, %s235
    %p242 = scmp.eq.s32.totalorder %s31, 1
    %p243 = por %p241, %p242
    %p244 = scmp.ne.s32.totalorder %s235, %s236
    %p245 = scmp.eq.s32.totalorder %s31, 0
    %p246 = por %p244, %p245
    %p247 = scmp.ne.s32.totalorder %s235, %s236
    %p248 = scmp.eq.s32.totalorder %s32, 1
    %p249 = por %p247, %p248
    %p251 = scmp.ne.s32.totalorder %s236, %s250
    %p252 = scmp.eq.s32.totalorder %s32, 0
    %p253 = por %p251, %p252
    %s255 = sadd.s32 %s254, 1
    %p258 = scmp.eq.s32.totalorder %s26, 1
    %p259 = scmp.ne.s32.totalorder %s254, %s256
    %p260 = scmp.eq.s32.totalorder %s26, 0
    %p261 = por %p259, %p260
    %p262 = scmp.ne.s32.totalorder %s254, %s256
    %p263 = scmp.eq.s32.totalorder %s31, 1
    %p264 = por %p262, %p263
    %p265 = scmp.ne.s32.totalorder %s256, %s257
    %p266 = scmp.eq.s32.totalorder %s31, 0
    %p267 = por %p265, %p266
    %p268 = scmp.ne.s32.totalorder %s256, %s257
    %p269 = scmp.eq.s32.totalorder %s32, 1
    %p270 = por %p268, %p269
    %p272 = scmp.ne.s32.totalorder %s257, %s271
    %p273 = scmp.eq.s32.totalorder %s32, 0
    %p274 = por %p272, %p273
    %s276 = sadd.s32 %s275, 1
    %p279 = scmp.eq.s32.totalorder %s26, 1
    %p280 = scmp.ne.s32.totalorder %s275, %s277
    %p281 = scmp.eq.s32.totalorder %s26, 0
    %p282 = por %p280, %p281
    %p283 = scmp.ne.s32.totalorder %s275, %s277
    %p284 = scmp.eq.s32.totalorder %s31, 1
    %p285 = por %p283, %p284
    %p286 = scmp.ne.s32.totalorder %s277, %s278
    %p287 = scmp.eq.s32.totalorder %s31, 0
    %p288 = por %p286, %p287
    %p289 = scmp.ne.s32.totalorder %s277, %s278
    %p290 = scmp.eq.s32.totalorder %s32, 1
    %p291 = por %p289, %p290
    %p293 = scmp.ne.s32.totalorder %s278, %s292
    %p294 = scmp.eq.s32.totalorder %s32, 0
    %p295 = por %p293, %p294
    %s297 = sadd.s32 %s296, 1
    %p300 = scmp.eq.s32.totalorder %s26, 1
    %p301 = scmp.ne.s32.totalorder %s296, %s298
    %p302 = scmp.eq.s32.totalorder %s26, 0
    %p303 = por %p301, %p302
    %p304 = scmp.ne.s32.totalorder %s296, %s298
    %p305 = scmp.eq.s32.totalorder %s31, 1
    %p306 = por %p304, %p305
    %p307 = scmp.ne.s32.totalorder %s298, %s299
    %p308 = scmp.eq.s32.totalorder %s31, 0
    %p309 = por %p307, %p308
    %p310 = scmp.ne.s32.totalorder %s298, %s299
    %p311 = scmp.eq.s32.totalorder %s32, 1
    %p312 = por %p310, %p311
    %p314 = scmp.ne.s32.totalorder %s299, %s313
    %p315 = scmp.eq.s32.totalorder %s32, 0
    %p316 = por %p314, %p315
    %s318 = sadd.s32 %s317, 1
    %p321 = scmp.eq.s32.totalorder %s26, 1
    %p322 = scmp.ne.s32.totalorder %s317, %s319
    %p323 = scmp.eq.s32.totalorder %s26, 0
    %p324 = por %p322, %p323
    %p325 = scmp.ne.s32.totalorder %s317, %s319
    %p326 = scmp.eq.s32.totalorder %s31, 1
    %p327 = por %p325, %p326
    %p328 = scmp.ne.s32.totalorder %s319, %s320
    %p329 = scmp.eq.s32.totalorder %s31, 0
    %p330 = por %p328, %p329
    %p331 = scmp.ne.s32.totalorder %s319, %s320
    %p332 = scmp.eq.s32.totalorder %s32, 1
    %p333 = por %p331, %p332
    %p335 = scmp.ne.s32.totalorder %s320, %s334
    %p336 = scmp.eq.s32.totalorder %s32, 0
    %p337 = por %p335, %p336
    %s339 = sadd.s32 %s338, 1
    %p342 = scmp.eq.s32.totalorder %s26, 1
    %p343 = scmp.ne.s32.totalorder %s338, %s340
    %p344 = scmp.eq.s32.totalorder %s26, 0
    %p345 = por %p343, %p344
    %p346 = scmp.ne.s32.totalorder %s338, %s340
    %p347 = scmp.eq.s32.totalorder %s31, 1
    %p348 = por %p346, %p347
    %p349 = scmp.ne.s32.totalorder %s340, %s341
    %p350 = scmp.eq.s32.totalorder %s31, 0
    %p351 = por %p349, %p350
    %p352 = scmp.ne.s32.totalorder %s340, %s341
    %p353 = scmp.eq.s32.totalorder %s32, 1
    %p354 = por %p352, %p353
    %p356 = scmp.ne.s32.totalorder %s341, %s355
    %p357 = scmp.eq.s32.totalorder %s32, 0
    %p358 = por %p356, %p357
    %s360 = sadd.s32 %s359, 1
    %p363 = scmp.eq.s32.totalorder %s26, 1
    %p364 = scmp.ne.s32.totalorder %s359, %s361
    %p365 = scmp.eq.s32.totalorder %s26, 0
    %p366 = por %p364, %p365
    %p367 = scmp.ne.s32.totalorder %s359, %s361
    %p368 = scmp.eq.s32.totalorder %s31, 1
    %p369 = por %p367, %p368
    %p370 = scmp.ne.s32.totalorder %s361, %s362
    %p371 = scmp.eq.s32.totalorder %s31, 0
    %p372 = por %p370, %p371
    %p373 = scmp.ne.s32.totalorder %s361, %s362
    %p374 = scmp.eq.s32.totalorder %s32, 1
    %p375 = por %p373, %p374
    %p377 = scmp.ne.s32.totalorder %s362, %s376
    %p378 = scmp.eq.s32.totalorder %s32, 0
    %p379 = por %p377, %p378
    %s381 = sadd.s32 %s380, 1
    %p384 = scmp.eq.s32.totalorder %s26, 1
    %p385 = scmp.ne.s32.totalorder %s380, %s382
    %p386 = scmp.eq.s32.totalorder %s26, 0
    %p387 = por %p385, %p386
    %p388 = scmp.ne.s32.totalorder %s380, %s382
    %p389 = scmp.eq.s32.totalorder %s31, 1
    %p390 = por %p388, %p389
    %p391 = scmp.ne.s32.totalorder %s382, %s383
    %p392 = scmp.eq.s32.totalorder %s31, 0
    %p393 = por %p391, %p392
    %p394 = scmp.ne.s32.totalorder %s382, %s383
    %p395 = scmp.eq.s32.totalorder %s32, 1
    %p396 = por %p394, %p395
    %p398 = scmp.ne.s32.totalorder %s383, %s397
    %p399 = scmp.eq.s32.totalorder %s32, 0
    %p400 = por %p398, %p399
    %s402 = sadd.s32 %s401, 1
    %p405 = scmp.eq.s32.totalorder %s26, 1
    %p406 = scmp.ne.s32.totalorder %s401, %s403
    %p407 = scmp.eq.s32.totalorder %s26, 0
    %p408 = por %p406, %p407
    %p409 = scmp.ne.s32.totalorder %s401, %s403
    %p410 = scmp.eq.s32.totalorder %s31, 1
    %p411 = por %p409, %p410
    %p412 = scmp.ne.s32.totalorder %s403, %s404
    %p413 = scmp.eq.s32.totalorder %s31, 0
    %p414 = por %p412, %p413
    %p415 = scmp.ne.s32.totalorder %s403, %s404
    %p416 = scmp.eq.s32.totalorder %s32, 1
    %p417 = por %p415, %p416
    %p419 = scmp.ne.s32.totalorder %s404, %s418
    %p420 = scmp.eq.s32.totalorder %s32, 0
    %p421 = por %p419, %p420
    %s422 = ssub.s32 %s26, %s33
    %p423 = scmp.eq.s32.totalorder %s422, 0
    %s425 = sadd.s32 %s424, 1
    %s426 = scalar_select %p423, %s424, %s425
    %p429 = pneg %p423
    %p430 = scmp.eq.s32.totalorder %s26, 1
    %p431 = por %p429, %p430
    %p432 = scmp.ne.s32.totalorder %s424, %s427
    %p433 = scmp.eq.s32.totalorder %s26, 0
    %p434 = por %p432, %p433
    %p435 = scmp.ne.s32.totalorder %s424, %s427
    %p436 = scmp.eq.s32.totalorder %s31, 1
    %p437 = por %p435, %p436
    %p438 = scmp.ne.s32.totalorder %s427, %s428
    %p439 = scmp.eq.s32.totalorder %s31, 0
    %p440 = por %p438, %p439
    %p441 = scmp.ne.s32.totalorder %s427, %s428
    %p442 = scmp.eq.s32.totalorder %s32, 1
    %p443 = por %p441, %p442
    %p445 = scmp.ne.s32.totalorder %s428, %s444
    %p446 = scmp.eq.s32.totalorder %s32, 0
    %p447 = por %p445, %p446
    %s448 = ssub.s32 %s26, %s33
    %p449 = scmp.eq.s32.totalorder %s448, 0
    %s451 = sadd.s32 %s450, 1
    %s452 = scalar_select %p449, %s450, %s451
    %p455 = pneg %p449
    %p456 = scmp.eq.s32.totalorder %s26, 1
    %p457 = por %p455, %p456
    %p458 = scmp.ne.s32.totalorder %s450, %s453
    %p459 = scmp.eq.s32.totalorder %s26, 0
    %p460 = por %p458, %p459
    %p461 = scmp.ne.s32.totalorder %s450, %s453
    %p462 = scmp.eq.s32.totalorder %s31, 1
    %p463 = por %p461, %p462
    %p464 = scmp.ne.s32.totalorder %s453, %s454
    %p465 = scmp.eq.s32.totalorder %s31, 0
    %p466 = por %p464, %p465
    %p467 = scmp.ne.s32.totalorder %s453, %s454
    %p468 = scmp.eq.s32.totalorder %s32, 1
    %p469 = por %p467, %p468
    %p471 = scmp.ne.s32.totalorder %s454, %s470
    %p472 = scmp.eq.s32.totalorder %s32, 0
    %p473 = por %p471, %p472
    %p474 = scmp.le.s32.totalorder 1, %s26
    %p475 = scmp.lt.s32.totalorder %s26, 3
    %p476 = pnand %p474, %p475
    %p477 = pneg %p476
    // Predicated region
    $region9: #{hrm_forward_pallas.1} parent=5 // pred_check
      _
    $region10: #{hrm_forward_pallas.1} parent=5 // pred_check_branch
      %479 = sbr.rel (%p476) target = $region12
    $region11: #{hrm_forward_pallas.1} parent=5 // pred_region
      %s480 = ssub.s32 %s26, 1
      // Predicated region
      $region13: #{hrm_forward_pallas.1} parent=11 // pred_check
        %p481 = pneg %p99
      $region14: #{hrm_forward_pallas.1} parent=11 // pred_check_branch
        %483 = sbr.rel (%p481) target = $region16
      $region15: #{hrm_forward_pallas.1} parent=11 // pred_region
        _
      $region16: #{hrm_forward_pallas.1} parent=11 // pred_fallthru
        _
      // Predicated region
      $region17: #{hrm_forward_pallas.1} parent=11 // pred_check
        %p484 = pneg %p120
      $region18: #{hrm_forward_pallas.1} parent=11 // pred_check_branch
        %486 = sbr.rel (%p484) target = $region20
      $region19: #{hrm_forward_pallas.1} parent=11 // pred_region
        _
      $region20: #{hrm_forward_pallas.1} parent=11 // pred_fallthru
        _
      // Predicated region
      $region21: #{hrm_forward_pallas.1} parent=11 // pred_check
        %p487 = pneg %p141
      $region22: #{hrm_forward_pallas.1} parent=11 // pred_check_branch
        %489 = sbr.rel (%p487) target = $region24
      $region23: #{hrm_forward_pallas.1} parent=11 // pred_region
        _
      $region24: #{hrm_forward_pallas.1} parent=11 // pred_fallthru
        _
      // Predicated region
      $region25: #{hrm_forward_pallas.1} parent=11 // pred_check
        %p490 = pneg %p162
      $region26: #{hrm_forward_pallas.1} parent=11 // pred_check_branch
        %492 = sbr.rel (%p490) target = $region28
      $region27: #{hrm_forward_pallas.1} parent=11 // pred_region
        _
      $region28: #{hrm_forward_pallas.1} parent=11 // pred_fallthru
        _
      // Predicated region
      $region29: #{hrm_forward_pallas.1} parent=11 // pred_check
        %p493 = pneg %p183
      $region30: #{hrm_forward_pallas.1} parent=11 // pred_check_branch
        %495 = sbr.rel (%p493) target = $region32
      $region31: #{hrm_forward_pallas.1} parent=11 // pred_region
        _
      $region32: #{hrm_forward_pallas.1} parent=11 // pred_fallthru
        _
      // Predicated region
      $region33: #{hrm_forward_pallas.1} parent=11 // pred_check
        %p496 = pneg %p204
      $region34: #{hrm_forward_pallas.1} parent=11 // pred_check_branch
        %498 = sbr.rel (%p496) target = $region36
      $region35: #{hrm_forward_pallas.1} parent=11 // pred_region
        _
      $region36: #{hrm_forward_pallas.1} parent=11 // pred_fallthru
        _
      // Predicated region
      $region37: #{hrm_forward_pallas.1} parent=11 // pred_check
        %p499 = pneg %p225
      $region38: #{hrm_forward_pallas.1} parent=11 // pred_check_branch
        %501 = sbr.rel (%p499) target = $region40
      $region39: #{hrm_forward_pallas.1} parent=11 // pred_region
        _
      $region40: #{hrm_forward_pallas.1} parent=11 // pred_fallthru
        _
      // Predicated region
      $region41: #{hrm_forward_pallas.1} parent=11 // pred_check
        %p502 = pneg %p246
      $region42: #{hrm_forward_pallas.1} parent=11 // pred_check_branch
        %504 = sbr.rel (%p502) target = $region44
      $region43: #{hrm_forward_pallas.1} parent=11 // pred_region
        _
      $region44: #{hrm_forward_pallas.1} parent=11 // pred_fallthru
        _
      // Predicated region
      $region45: #{hrm_forward_pallas.1} parent=11 // pred_check
        %p505 = pneg %p267
      $region46: #{hrm_forward_pallas.1} parent=11 // pred_check_branch
        %507 = sbr.rel (%p505) target = $region48
      $region47: #{hrm_forward_pallas.1} parent=11 // pred_region
        _
      $region48: #{hrm_forward_pallas.1} parent=11 // pred_fallthru
        _
      // Predicated region
      $region49: #{hrm_forward_pallas.1} parent=11 // pred_check
        %p508 = pneg %p288
      $region50: #{hrm_forward_pallas.1} parent=11 // pred_check_branch
        %510 = sbr.rel (%p508) target = $region52
      $region51: #{hrm_forward_pallas.1} parent=11 // pred_region
        _
      $region52: #{hrm_forward_pallas.1} parent=11 // pred_fallthru
        _
      // Predicated region
      $region53: #{hrm_forward_pallas.1} parent=11 // pred_check
        %p511 = pneg %p309
      $region54: #{hrm_forward_pallas.1} parent=11 // pred_check_branch
        %513 = sbr.rel (%p511) target = $region56
      $region55: #{hrm_forward_pallas.1} parent=11 // pred_region
        _
      $region56: #{hrm_forward_pallas.1} parent=11 // pred_fallthru
        _
      // Predicated region
      $region57: #{hrm_forward_pallas.1} parent=11 // pred_check
        %p514 = pneg %p330
      $region58: #{hrm_forward_pallas.1} parent=11 // pred_check_branch
        %516 = sbr.rel (%p514) target = $region60
      $region59: #{hrm_forward_pallas.1} parent=11 // pred_region
        _
      $region60: #{hrm_forward_pallas.1} parent=11 // pred_fallthru
        _
      // Predicated region
      $region61: #{hrm_forward_pallas.1} parent=11 // pred_check
        %p517 = pneg %p351
      $region62: #{hrm_forward_pallas.1} parent=11 // pred_check_branch
        %519 = sbr.rel (%p517) target = $region64
      $region63: #{hrm_forward_pallas.1} parent=11 // pred_region
        _
      $region64: #{hrm_forward_pallas.1} parent=11 // pred_fallthru
        _
      // Predicated region
      $region65: #{hrm_forward_pallas.1} parent=11 // pred_check
        %p520 = pneg %p372
      $region66: #{hrm_forward_pallas.1} parent=11 // pred_check_branch
        %522 = sbr.rel (%p520) target = $region68
      $region67: #{hrm_forward_pallas.1} parent=11 // pred_region
        _
      $region68: #{hrm_forward_pallas.1} parent=11 // pred_fallthru
        _
      // Predicated region
      $region69: #{hrm_forward_pallas.1} parent=11 // pred_check
        %p523 = pneg %p393
      $region70: #{hrm_forward_pallas.1} parent=11 // pred_check_branch
        %525 = sbr.rel (%p523) target = $region72
      $region71: #{hrm_forward_pallas.1} parent=11 // pred_region
        _
      $region72: #{hrm_forward_pallas.1} parent=11 // pred_fallthru
        _
      // Predicated region
      $region73: #{hrm_forward_pallas.1} parent=11 // pred_check
        %p526 = pneg %p414
      $region74: #{hrm_forward_pallas.1} parent=11 // pred_check_branch
        %528 = sbr.rel (%p526) target = $region76
      $region75: #{hrm_forward_pallas.1} parent=11 // pred_region
        _
      $region76: #{hrm_forward_pallas.1} parent=11 // pred_fallthru
        _
    $region12: #{hrm_forward_pallas.1} parent=5 // pred_fallthru
      _
    %p529 = scmp.lt.s32.totalorder %s26, 2
    // Predicated region
    $region77: #{hrm_forward_pallas.1} parent=5 // pred_check
      %p530 = pneg %p529
    $region78: #{hrm_forward_pallas.1} parent=5 // pred_check_branch
      %532 = sbr.rel (%p530) target = $region80
    $region79: #{hrm_forward_pallas.1} parent=5 // pred_region
      // Predicated region
      $region81: #{hrm_forward_pallas.1} parent=79 // pred_check
        %p533 = pneg %p46
      $region82: #{hrm_forward_pallas.1} parent=79 // pred_check_branch
        %535 = sbr.rel (%p533) target = $region84
      $region83: #{hrm_forward_pallas.1} parent=79 // pred_region
        %p536 = scmp.lt.s32.totalorder %s26, 1
        %s537 = scalar_select %p536, %s26, 1
        %s538 = smul.addr %s537, 3
        %s539 = smul.addr %s538, 8
        %s540 = scalar_lea.vmem %s0, %s539
      $region84: #{hrm_forward_pallas.1} parent=79 // pred_fallthru
        _
      // Predicated region
      $region85: #{hrm_forward_pallas.1} parent=79 // pred_check
        %p541 = pneg %p72
      $region86: #{hrm_forward_pallas.1} parent=79 // pred_check_branch
        %543 = sbr.rel (%p541) target = $region88
      $region87: #{hrm_forward_pallas.1} parent=79 // pred_region
        %p544 = scmp.lt.s32.totalorder %s26, 1
        %s545 = scalar_select %p544, %s26, 1
        %s546 = smul.addr %s545, 8
        %s547 = scalar_lea.vmem %s1, %s546
      $region88: #{hrm_forward_pallas.1} parent=79 // pred_fallthru
        _
    $region80: #{hrm_forward_pallas.1} parent=5 // pred_fallthru
      _
    %p548 = scmp.le.s32.totalorder 1, %s26
    %p549 = scmp.lt.s32.totalorder %s26, 3
    %p550 = pnand %p548, %p549
    %p551 = pneg %p550
    // Predicated region
    $region89: #{hrm_forward_pallas.1} parent=5 // pred_check
      _
    $region90: #{hrm_forward_pallas.1} parent=5 // pred_check_branch
      %553 = sbr.rel (%p550) target = $region92
    $region91: #{hrm_forward_pallas.1} parent=5 // pred_region
      %s554 = ssub.s32 %s26, 1
      %p555 = scmp.lt.s32.totalorder %s31, 1
      %s556 = scalar_select %p555, %s31, 1
      %s557 = smul.addr %s556, 3
      %s558 = smul.addr %s557, 8
      %s559 = scalar_lea.vmem %s0, %s558
      %p560 = pneg %p52
      %p561 = pneg %p49
      %p562 = scmp.lt.s32.totalorder %s31, 1
      %s563 = scalar_select %p562, %s31, 1
      %s564 = smul.addr %s563, 8
      %s565 = scalar_lea.vmem %s1, %s564
      %p566 = pneg %p78
      %p567 = pneg %p75
      %p568 = pneg %p99
      %p569 = pneg %p96
      %p570 = pneg %p120
      %p571 = pneg %p117
      %p572 = pneg %p141
      %p573 = pneg %p138
      %p574 = pneg %p162
      %p575 = pneg %p159
      %p576 = pneg %p183
      %p577 = pneg %p180
      %p578 = pneg %p204
      %p579 = pneg %p201
      %p580 = pneg %p225
      %p581 = pneg %p222
      %p582 = pneg %p246
      %p583 = pneg %p243
      %p584 = pneg %p267
      %p585 = pneg %p264
      %p586 = pneg %p288
      %p587 = pneg %p285
      %p588 = pneg %p309
      %p589 = pneg %p306
      %p590 = pneg %p330
      %p591 = pneg %p327
      %p592 = pneg %p351
      %p593 = pneg %p348
      %p594 = pneg %p372
      %p595 = pneg %p369
      %p596 = pneg %p393
      %p597 = pneg %p390
      %p598 = pneg %p414
      %p599 = pneg %p411
      %p600 = pneg %p440
      %p601 = pneg %p437
      %p602 = scmp.lt.s32.totalorder %s31, 1
      %s603 = scalar_select %p602, %s31, 1
      %s604 = smul.addr %s603, 3
      %s605 = smul.addr %s604, 8
      %s606 = scalar_lea.vmem %s18, %s605
      %p607 = pneg %p466
      %p608 = pneg %p463
      %p609 = scmp.lt.s32.totalorder %s31, 1
      %s610 = scalar_select %p609, %s31, 1
      %s611 = smul.addr %s610, 8
      %s612 = scalar_lea.vmem %s19, %s611
      %p613 = scmp.lt.s32.totalorder %s31, 1
      %s614 = scalar_select %p613, %s31, 1
      %s615 = smul.addr %s614, 3
      %s616 = smul.addr %s615, 8
      %s617 = scalar_lea.vmem %s0, %s616
      %p618 = scmp.lt.s32.totalorder %s31, 1
      %s619 = scalar_select %p618, %s31, 1
      %s620 = smul.addr %s619, 8
      %s621 = scalar_lea.vmem %s1, %s620
      %p622 = scmp.lt.s32.totalorder %s31, 1
      %s623 = scalar_select %p622, %s31, 1
      %s624 = smul.addr %s623, 3
      %s625 = smul.addr %s624, 8
      %s626 = scalar_lea.vmem %s18, %s625
      %p627 = scmp.lt.s32.totalorder %s31, 1
      %s628 = scalar_select %p627, %s31, 1
      %s629 = smul.addr %s628, 8
      %s630 = scalar_lea.vmem %s19, %s629
      %v632 = vld [vmem:[%s2] sm:$0x7]
      %v633 = vld [vmem:[%s3] sm:$0x1]
      %v634 = vld [vmem:[%s617] sm:$0xff]
      %v635 = vld [vmem:[%s617 + $0x8] sm:$0xff]
      %v636 = vld [vmem:[%s617 + $0x10] sm:$0xff]
      %v637 = vld [vmem:[%s621] sm:$0xff]
      %v638 = vld [vmem:[%s5] sm:$0xff]
      %639 = vrot.lane.b32.xlu0 %v634, 19
      %v640 = vpop.permute.xlu0 %639
      %641 = vrot.lane.b32.xlu0 %v635, 19
      %v642 = vpop.permute.xlu0 %641
      %643 = vrot.lane.b32.xlu0 %v636, 19
      %v644 = vpop.permute.xlu0 %643
      %v645 = vlaneseq
      %v646 = vand.u32 %v645, 127
      %vm647 = vcmp.lt.s32.totalorder %v646, 19
      %v648 = vsel %vm647, %v642, %v644
      %v649 = vsel %vm647, %v640, %v642
      %v650 = vsel %vm647, %v644, %v640
      %651 = vrot.lane.b32.xlu0 %v634, 18
      %v652 = vpop.permute.xlu0 %651
      %653 = vrot.lane.b32.xlu0 %v635, 18
      %v654 = vpop.permute.xlu0 %653
      %655 = vrot.lane.b32.xlu0 %v636, 18
      %v656 = vpop.permute.xlu0 %655
      %vm657 = vcmp.lt.s32.totalorder %v646, 18
      %v658 = vsel %vm657, %v654, %v656
      %v659 = vsel %vm657, %v652, %v654
      %v660 = vsel %vm657, %v656, %v652
      %661 = vrot.lane.b32.xlu0 %v634, 17
      %v662 = vpop.permute.xlu0 %661
      %663 = vrot.lane.b32.xlu0 %v635, 17
      %v664 = vpop.permute.xlu0 %663
      %665 = vrot.lane.b32.xlu0 %v636, 17
      %v666 = vpop.permute.xlu0 %665
      %vm667 = vcmp.lt.s32.totalorder %v646, 17
      %v668 = vsel %vm667, %v664, %v666
      %v669 = vsel %vm667, %v662, %v664
      %v670 = vsel %vm667, %v666, %v662
      %671 = vrot.lane.b32.xlu0 %v634, 1
      %v672 = vpop.permute.xlu0 %671
      %673 = vrot.lane.b32.xlu0 %v635, 1
      %v674 = vpop.permute.xlu0 %673
      %675 = vrot.lane.b32.xlu0 %v636, 1
      %v676 = vpop.permute.xlu0 %675
      %vm677 = vcmp.lt.s32.totalorder %v646, 1
      %v678 = vsel %vm677, %v674, %v676
      %v679 = vsel %vm677, %v672, %v674
      %v680 = vsel %vm677, %v676, %v672
      %681 = vrot.lane.b32.xlu0 %v634, 127
      %v682 = vpop.permute.xlu0 %681
      %683 = vrot.lane.b32.xlu0 %v635, 127
      %v684 = vpop.permute.xlu0 %683
      %685 = vrot.lane.b32.xlu0 %v636, 127
      %v686 = vpop.permute.xlu0 %685
      %vm687 = vcmp.lt.s32.totalorder %v646, 127
      %v688 = vsel %vm687, %v684, %v686
      %v689 = vsel %vm687, %v682, %v684
      %v690 = vsel %vm687, %v686, %v682
      %691 = vrot.lane.b32.xlu0 %v634, 111
      %v692 = vpop.permute.xlu0 %691
      %693 = vrot.lane.b32.xlu0 %v635, 111
      %v694 = vpop.permute.xlu0 %693
      %695 = vrot.lane.b32.xlu0 %v636, 111
      %v696 = vpop.permute.xlu0 %695
      %vm697 = vcmp.lt.s32.totalorder %v646, 111
      %v698 = vsel %vm697, %v694, %v696
      %v699 = vsel %vm697, %v692, %v694
      %v700 = vsel %vm697, %v696, %v692
      %701 = vrot.lane.b32.xlu0 %v634, 110
      %v702 = vpop.permute.xlu0 %701
      %703 = vrot.lane.b32.xlu0 %v635, 110
      %v704 = vpop.permute.xlu0 %703
      %705 = vrot.lane.b32.xlu0 %v636, 110
      %v706 = vpop.permute.xlu0 %705
      %vm707 = vcmp.lt.s32.totalorder %v646, 110
      %v708 = vsel %vm707, %v704, %v706
      %v709 = vsel %vm707, %v702, %v704
      %v710 = vsel %vm707, %v706, %v702
      %711 = vrot.lane.b32.xlu0 %v634, 109
      %v712 = vpop.permute.xlu0 %711
      %713 = vrot.lane.b32.xlu0 %v635, 109
      %v714 = vpop.permute.xlu0 %713
      %715 = vrot.lane.b32.xlu0 %v636, 109
      %v716 = vpop.permute.xlu0 %715
      %vm717 = vcmp.lt.s32.totalorder %v646, 109
      %v718 = vsel %vm717, %v714, %v716
      %v719 = vsel %vm717, %v712, %v714
      %v720 = vsel %vm717, %v716, %v712
      %v721 = vpack.c.bf16 %v660, %v650
      %v722 = vpack.c.bf16 %v659, %v649
      %v723 = vpack.c.bf16 %v658, %v648
      %v724 = vpack.c.bf16 %v680, %v670
      %v725 = vpack.c.bf16 %v679, %v669
      %v726 = vpack.c.bf16 %v678, %v668
      %v727 = vpack.c.bf16 %v689, %v634
      %v728 = vpack.c.bf16 %v688, %v635
      %v729 = vpack.c.bf16 %v690, %v636
      %v730 = vpack.c.bf16 %v709, %v699
      %v731 = vpack.c.bf16 %v708, %v698
      %v732 = vpack.c.bf16 %v710, %v700
      %v733 = vpack.c.bf16 %v719, %v719
      %v734 = vpack.c.bf16 %v718, %v718
      %v735 = vpack.c.bf16 %v720, %v720
      %v736 = vld [vmem:[%s4] sm:$0xf]
      %738 = vset.pattern.permute.xlu0 0
      %739 = vperm.xlu0 %738, %v638
      %v740 = vpop.permute.xlu0 %739
      %vm742 = vcmask 588800
      %v744 = vsel %vm742, %v736, 0
      %vm746 = vcmask 1043456
      %v748 = vsel %vm746, %v733, 0
      %v751 = vsel %vm746, %v734, 0
      %v754 = vsel %vm746, %v735, 0
      %756 = vmatprep.subr.bf16.mxu0 %v722
      %757 = vmatpush1.bf16.msra.mxu0 %v721
      %758 = vmatprep.subr.bf16.mxu0 %v725
      %759 = vmatpush1.bf16.msra.mxu0 %v724
      %760 = vmatprep.subr.bf16.mxu0 %v728
      %761 = vmatpush1.bf16.msra.mxu0 %v727
      %762 = vmatprep.subr.bf16.mxu0 %v731
      %763 = vmatpush1.bf16.msra.mxu0 %v730
      %764 = vmatprep.subr.bf16.mxu0 %v751
      %765 = vmatpush1.bf16.msra.mxu0 %v748
      %766 = vmatprep.subr.bf16.mxu0 0
      %767 = vmatpush1.bf16.msra.mxu0 0
      %768 = vmatprep.subr.bf16.mxu0 0
      %769 = vmatpush1.bf16.msra.mxu0 0
      %770 = vmatprep.subr.bf16.mxu0 0
      %771 = vmatpush1.bf16.msra.mxu0 0
      %772 = vmatprep.subr.bf16.mxu0 0
      %773 = vmatpush1.bf16.msra.mxu0 0
      %774 = vmatprep.subr.bf16.mxu0 0
      %775 = vmatpush1.bf16.msra.mxu0 0
      %776 = vmatprep.subr.bf16.mxu0 0
      %777 = vmatpush1.bf16.msra.mxu0 0
      %778 = vmatprep.subr.bf16.mxu0 0
      %779 = vmatpush1.bf16.msra.mxu0 0
      %780 = vmatprep.subr.bf16.mxu0 0
      %781 = vmatpush1.bf16.msra.mxu0 0
      %782 = vmatprep.subr.bf16.mxu0 0
      %783 = vmatpush1.bf16.msra.mxu0 0
      %784 = vmatprep.subr.bf16.mxu0 0
      %785 = vmatpush1.bf16.msra.mxu0 0
      %786 = vmatprep.subr.bf16.mxu0 0
      %787 = vmatpush1.bf16.msra.mxu0 0
      %788 = vmatprep.mubr.bf16.mxu0 0
      %789 = vmatmul.mubr.bf16.gmra.mrb[0].mxu0 %v744
      %v790 = vpop.f32.mrb[0].mxu0
      %v791 = vadd.f32 %v740, %v790
      %v792 = vpop.f32.mrb[0].mxu0
      %v793 = vadd.f32 %v740, %v792
      %v794 = vpop.f32.mrb[0].mxu0
      %v795 = vpop.f32.mrb[0].mxu0
      %796 = vdwg.mxu0
      %797 = vmatprep.subr.bf16.mxu0 0
      %798 = vmatpush1.bf16.msra.mxu0 %v723
      %799 = vmatprep.subr.bf16.mxu0 0
      %800 = vmatpush1.bf16.msra.mxu0 %v726
      %801 = vmatprep.subr.bf16.mxu0 0
      %802 = vmatpush1.bf16.msra.mxu0 %v729
      %803 = vmatprep.subr.bf16.mxu0 0
      %804 = vmatpush1.bf16.msra.mxu0 %v732
      %805 = vmatprep.subr.bf16.mxu0 0
      %806 = vmatpush1.bf16.msra.mxu0 %v754
      %807 = vmatprep.subr.bf16.mxu0 0
      %808 = vmatpush1.bf16.msra.mxu0 0
      %809 = vmatprep.subr.bf16.mxu0 0
      %810 = vmatpush1.bf16.msra.mxu0 0
      %811 = vmatprep.subr.bf16.mxu0 0
      %812 = vmatpush1.bf16.msra.mxu0 0
      %813 = vmatprep.subr.bf16.mxu0 0
      %814 = vmatpush1.bf16.msra.mxu0 0
      %815 = vmatprep.subr.bf16.mxu0 0
      %816 = vmatpush1.bf16.msra.mxu0 0
      %817 = vmatprep.subr.bf16.mxu0 0
      %818 = vmatpush1.bf16.msra.mxu0 0
      %819 = vmatprep.subr.bf16.mxu0 0
      %820 = vmatpush1.bf16.msra.mxu0 0
      %821 = vmatprep.subr.bf16.mxu0 0
      %822 = vmatpush1.bf16.msra.mxu0 0
      %823 = vmatprep.subr.bf16.mxu0 0
      %824 = vmatpush1.bf16.msra.mxu0 0
      %825 = vmatprep.subr.bf16.mxu0 0
      %826 = vmatpush1.bf16.msra.mxu0 0
      %827 = vmatprep.subr.bf16.mxu0 0
      %828 = vmatpush1.bf16.msra.mxu0 0
      %829 = vmatprep.mubr.bf16.mxu0 0
      %830 = vmatmul.mubr.bf16.gmra.mrb[0].mxu0 %v744
      %v831 = vpop.f32.mrb[0].mxu0
      %v832 = vadd.f32 %v740, %v831
      %v833 = vpop.f32.mrb[0].mxu0
      %v834 = vpop.f32.mrb[0].mxu0
      %v835 = vpop.f32.mrb[0].mxu0
      %836 = vdwg.mxu0
      %v837 = vmax.f32 %v791, 0.0
      %v838 = vmax.f32 %v793, 0.0
      %v839 = vmax.f32 %v832, 0.0
      %v841 = vlaneseq
      %v842 = vshrl.u32 %v841, 7
      %v843 = vsub.s32 0, %v842
      %v844 = vrot.slane %v632, %v843
      %v845 = vlaneseq
      %v846 = vshrl.u32 %v845, 7
      %v847 = vsub.s32 1, %v846
      %v848 = vrot.slane %v632, %v847
      %v849 = vlaneseq
      %v850 = vshrl.u32 %v849, 7
      %v851 = vsub.s32 2, %v850
      %v852 = vrot.slane %v632, %v851
      %v856 = vmul.f32 %v837, %v844
      %v857 = vmul.f32 %v838, %v848
      %v858 = vmul.f32 %v839, %v852
      %v859 = vld [vmem:[%s7] sm:$0xff]
      %860 = vrot.lane.b32.xlu0 %v856, 19
      %v861 = vpop.permute.xlu0 %860
      %862 = vrot.lane.b32.xlu0 %v857, 19
      %v863 = vpop.permute.xlu0 %862
      %864 = vrot.lane.b32.xlu0 %v858, 19
      %v865 = vpop.permute.xlu0 %864
      %v866 = vsel %vm647, %v863, %v865
      %v867 = vsel %vm647, %v861, %v863
      %v868 = vsel %vm647, %v865, %v861
      %869 = vrot.lane.b32.xlu0 %v856, 18
      %v870 = vpop.permute.xlu0 %869
      %871 = vrot.lane.b32.xlu0 %v857, 18
      %v872 = vpop.permute.xlu0 %871
      %873 = vrot.lane.b32.xlu0 %v858, 18
      %v874 = vpop.permute.xlu0 %873
      %v875 = vsel %vm657, %v872, %v874
      %v876 = vsel %vm657, %v870, %v872
      %v877 = vsel %vm657, %v874, %v870
      %878 = vrot.lane.b32.xlu0 %v856, 17
      %v879 = vpop.permute.xlu0 %878
      %880 = vrot.lane.b32.xlu0 %v857, 17
      %v881 = vpop.permute.xlu0 %880
      %882 = vrot.lane.b32.xlu0 %v858, 17
      %v883 = vpop.permute.xlu0 %882
      %v884 = vsel %vm667, %v881, %v883
      %v885 = vsel %vm667, %v879, %v881
      %v886 = vsel %vm667, %v883, %v879
      %887 = vrot.lane.b32.xlu0 %v856, 1
      %v888 = vpop.permute.xlu0 %887
      %889 = vrot.lane.b32.xlu0 %v857, 1
      %v890 = vpop.permute.xlu0 %889
      %891 = vrot.lane.b32.xlu0 %v858, 1
      %v892 = vpop.permute.xlu0 %891
      %v893 = vsel %vm677, %v890, %v892
      %v894 = vsel %vm677, %v888, %v890
      %v895 = vsel %vm677, %v892, %v888
      %896 = vrot.lane.b32.xlu0 %v856, 127
      %v897 = vpop.permute.xlu0 %896
      %898 = vrot.lane.b32.xlu0 %v857, 127
      %v899 = vpop.permute.xlu0 %898
      %900 = vrot.lane.b32.xlu0 %v858, 127
      %v901 = vpop.permute.xlu0 %900
      %v902 = vsel %vm687, %v899, %v901
      %v903 = vsel %vm687, %v897, %v899
      %v904 = vsel %vm687, %v901, %v897
      %905 = vrot.lane.b32.xlu0 %v856, 111
      %v906 = vpop.permute.xlu0 %905
      %907 = vrot.lane.b32.xlu0 %v857, 111
      %v908 = vpop.permute.xlu0 %907
      %909 = vrot.lane.b32.xlu0 %v858, 111
      %v910 = vpop.permute.xlu0 %909
      %v911 = vsel %vm697, %v908, %v910
      %v912 = vsel %vm697, %v906, %v908
      %v913 = vsel %vm697, %v910, %v906
      %914 = vrot.lane.b32.xlu0 %v856, 110
      %v915 = vpop.permute.xlu0 %914
      %916 = vrot.lane.b32.xlu0 %v857, 110
      %v917 = vpop.permute.xlu0 %916
      %918 = vrot.lane.b32.xlu0 %v858, 110
      %v919 = vpop.permute.xlu0 %918
      %v920 = vsel %vm707, %v917, %v919
      %v921 = vsel %vm707, %v915, %v917
      %v922 = vsel %vm707, %v919, %v915
      %923 = vrot.lane.b32.xlu0 %v856, 109
      %v924 = vpop.permute.xlu0 %923
      %925 = vrot.lane.b32.xlu0 %v857, 109
      %v926 = vpop.permute.xlu0 %925
      %927 = vrot.lane.b32.xlu0 %v858, 109
      %v928 = vpop.permute.xlu0 %927
      %v929 = vsel %vm717, %v926, %v928
      %v930 = vsel %vm717, %v924, %v926
      %v931 = vsel %vm717, %v928, %v924
      %v932 = vpack.c.bf16 %v877, %v868
      %v933 = vpack.c.bf16 %v876, %v867
      %v934 = vpack.c.bf16 %v875, %v866
      %v935 = vpack.c.bf16 %v895, %v886
      %v936 = vpack.c.bf16 %v894, %v885
      %v937 = vpack.c.bf16 %v893, %v884
      %v938 = vpack.c.bf16 %v903, %v856
      %v939 = vpack.c.bf16 %v902, %v857
      %v940 = vpack.c.bf16 %v904, %v858
      %v941 = vpack.c.bf16 %v921, %v912
      %v942 = vpack.c.bf16 %v920, %v911
      %v943 = vpack.c.bf16 %v922, %v913
      %v944 = vpack.c.bf16 %v930, %v930
      %v945 = vpack.c.bf16 %v929, %v929
      %v946 = vpack.c.bf16 %v931, %v931
      %v947 = vld [vmem:[%s6] sm:$0xf]
      %949 = vset.pattern.permute.xlu0 0
      %950 = vperm.xlu0 %949, %v859
      %v951 = vpop.permute.xlu0 %950
      %v954 = vsel %vm742, %v947, 0
      %v957 = vsel %vm746, %v944, 0
      %v960 = vsel %vm746, %v945, 0
      %v963 = vsel %vm746, %v946, 0
      %965 = vmatprep.subr.bf16.mxu0 %v933
      %966 = vmatpush1.bf16.msra.mxu0 %v932
      %967 = vmatprep.subr.bf16.mxu0 %v936
      %968 = vmatpush1.bf16.msra.mxu0 %v935
      %969 = vmatprep.subr.bf16.mxu0 %v939
      %970 = vmatpush1.bf16.msra.mxu0 %v938
      %971 = vmatprep.subr.bf16.mxu0 %v942
      %972 = vmatpush1.bf16.msra.mxu0 %v941
      %973 = vmatprep.subr.bf16.mxu0 %v960
      %974 = vmatpush1.bf16.msra.mxu0 %v957
      %975 = vmatprep.subr.bf16.mxu0 0
      %976 = vmatpush1.bf16.msra.mxu0 0
      %977 = vmatprep.subr.bf16.mxu0 0
      %978 = vmatpush1.bf16.msra.mxu0 0
      %979 = vmatprep.subr.bf16.mxu0 0
      %980 = vmatpush1.bf16.msra.mxu0 0
      %981 = vmatprep.subr.bf16.mxu0 0
      %982 = vmatpush1.bf16.msra.mxu0 0
      %983 = vmatprep.subr.bf16.mxu0 0
      %984 = vmatpush1.bf16.msra.mxu0 0
      %985 = vmatprep.subr.bf16.mxu0 0
      %986 = vmatpush1.bf16.msra.mxu0 0
      %987 = vmatprep.subr.bf16.mxu0 0
      %988 = vmatpush1.bf16.msra.mxu0 0
      %989 = vmatprep.subr.bf16.mxu0 0
      %990 = vmatpush1.bf16.msra.mxu0 0
      %991 = vmatprep.subr.bf16.mxu0 0
      %992 = vmatpush1.bf16.msra.mxu0 0
      %993 = vmatprep.subr.bf16.mxu0 0
      %994 = vmatpush1.bf16.msra.mxu0 0
      %995 = vmatprep.subr.bf16.mxu0 0
      %996 = vmatpush1.bf16.msra.mxu0 0
      %997 = vmatprep.mubr.bf16.mxu0 0
      %998 = vmatmul.mubr.bf16.gmra.mrb[0].mxu0 %v954
      %v999 = vpop.f32.mrb[0].mxu0
      %v1000 = vadd.f32 %v951, %v999
      %v1001 = vpop.f32.mrb[0].mxu0
      %v1002 = vadd.f32 %v951, %v1001
      %v1003 = vpop.f32.mrb[0].mxu0
      %v1004 = vpop.f32.mrb[0].mxu0
      %1005 = vdwg.mxu0
      %1006 = vmatprep.subr.bf16.mxu0 0
      %1007 = vmatpush1.bf16.msra.mxu0 %v934
      %1008 = vmatprep.subr.bf16.mxu0 0
      %1009 = vmatpush1.bf16.msra.mxu0 %v937
      %1010 = vmatprep.subr.bf16.mxu0 0
      %1011 = vmatpush1.bf16.msra.mxu0 %v940
      %1012 = vmatprep.subr.bf16.mxu0 0
      %1013 = vmatpush1.bf16.msra.mxu0 %v943
      %1014 = vmatprep.subr.bf16.mxu0 0
      %1015 = vmatpush1.bf16.msra.mxu0 %v963
      %1016 = vmatprep.subr.bf16.mxu0 0
      %1017 = vmatpush1.bf16.msra.mxu0 0
      %1018 = vmatprep.subr.bf16.mxu0 0
      %1019 = vmatpush1.bf16.msra.mxu0 0
      %1020 = vmatprep.subr.bf16.mxu0 0
      %1021 = vmatpush1.bf16.msra.mxu0 0
      %1022 = vmatprep.subr.bf16.mxu0 0
      %1023 = vmatpush1.bf16.msra.mxu0 0
      %1024 = vmatprep.subr.bf16.mxu0 0
      %1025 = vmatpush1.bf16.msra.mxu0 0
      %1026 = vmatprep.subr.bf16.mxu0 0
      %1027 = vmatpush1.bf16.msra.mxu0 0
      %1028 = vmatprep.subr.bf16.mxu0 0
      %1029 = vmatpush1.bf16.msra.mxu0 0
      %1030 = vmatprep.subr.bf16.mxu0 0
      %1031 = vmatpush1.bf16.msra.mxu0 0
      %1032 = vmatprep.subr.bf16.mxu0 0
      %1033 = vmatpush1.bf16.msra.mxu0 0
      %1034 = vmatprep.subr.bf16.mxu0 0
      %1035 = vmatpush1.bf16.msra.mxu0 0
      %1036 = vmatprep.subr.bf16.mxu0 0
      %1037 = vmatpush1.bf16.msra.mxu0 0
      %1038 = vmatprep.mubr.bf16.mxu0 0
      %1039 = vmatmul.mubr.bf16.gmra.mrb[0].mxu0 %v954
      %v1040 = vpop.f32.mrb[0].mxu0
      %v1041 = vadd.f32 %v951, %v1040
      %v1042 = vpop.f32.mrb[0].mxu0
      %v1043 = vpop.f32.mrb[0].mxu0
      %v1044 = vpop.f32.mrb[0].mxu0
      %1045 = vdwg.mxu0
      %v1046 = vadd.f32 %v1000, %v634
      %v1047 = vadd.f32 %v1002, %v635
      %v1048 = vadd.f32 %v1041, %v636
      %v1049 = vmax.f32 %v1046, 0.0
      %v1050 = vmax.f32 %v1047, 0.0
      %v1051 = vmax.f32 %v1048, 0.0
      %v1052 = vmul.f32 %v1049, %v844
      %v1053 = vmul.f32 %v1050, %v848
      %v1054 = vmul.f32 %v1051, %v852
      %v1055 = vld [vmem:[%s9] sm:$0xff]
      %1056 = vrot.lane.b32.xlu0 %v637, 11
      %v1057 = vpop.permute.xlu0 %1056
      %1058 = vrot.lane.b32.xlu0 %v637, 10
      %v1059 = vpop.permute.xlu0 %1058
      %1060 = vrot.lane.b32.xlu0 %v637, 9
      %v1061 = vpop.permute.xlu0 %1060
      %1062 = vrot.lane.b32.xlu0 %v637, 1
      %v1063 = vpop.permute.xlu0 %1062
      %1064 = vrot.lane.b32.xlu0 %v637, 127
      %v1065 = vpop.permute.xlu0 %1064
      %1066 = vrot.lane.b32.xlu0 %v637, 119
      %v1067 = vpop.permute.xlu0 %1066
      %1068 = vrot.lane.b32.xlu0 %v637, 118
      %v1069 = vpop.permute.xlu0 %1068
      %1070 = vrot.lane.b32.xlu0 %v637, 117
      %v1071 = vpop.permute.xlu0 %1070
      %v1072 = vpack.c.bf16 %v1059, %v1057
      %v1073 = vpack.c.bf16 %v1063, %v1061
      %v1074 = vpack.c.bf16 %v1065, %v637
      %v1075 = vpack.c.bf16 %v1069, %v1067
      %v1076 = vpack.c.bf16 %v1071, %v1071
      %v1077 = vld [vmem:[%s8] sm:$0xf]
      %1079 = vset.pattern.permute.xlu0 0
      %1080 = vperm.xlu0 %1079, %v1055
      %v1081 = vpop.permute.xlu0 %1080
      %v1084 = vsel %vm742, %v1077, 0
      %v1087 = vsel %vm746, %v1076, 0
      %1089 = vmatprep.subr.bf16.mxu0 0
      %1090 = vmatpush1.bf16.msra.mxu0 %v1072
      %1091 = vmatprep.subr.bf16.mxu0 0
      %1092 = vmatpush1.bf16.msra.mxu0 %v1073
      %1093 = vmatprep.subr.bf16.mxu0 0
      %1094 = vmatpush1.bf16.msra.mxu0 %v1074
      %1095 = vmatprep.subr.bf16.mxu0 0
      %1096 = vmatpush1.bf16.msra.mxu0 %v1075
      %1097 = vmatprep.subr.bf16.mxu0 0
      %1098 = vmatpush1.bf16.msra.mxu0 %v1087
      %1099 = vmatprep.subr.bf16.mxu0 0
      %1100 = vmatpush1.bf16.msra.mxu0 0
      %1101 = vmatprep.subr.bf16.mxu0 0
      %1102 = vmatpush1.bf16.msra.mxu0 0
      %1103 = vmatprep.subr.bf16.mxu0 0
      %1104 = vmatpush1.bf16.msra.mxu0 0
      %1105 = vmatprep.subr.bf16.mxu0 0
      %1106 = vmatpush1.bf16.msra.mxu0 0
      %1107 = vmatprep.subr.bf16.mxu0 0
      %1108 = vmatpush1.bf16.msra.mxu0 0
      %1109 = vmatprep.subr.bf16.mxu0 0
      %1110 = vmatpush1.bf16.msra.mxu0 0
      %1111 = vmatprep.subr.bf16.mxu0 0
      %1112 = vmatpush1.bf16.msra.mxu0 0
      %1113 = vmatprep.subr.bf16.mxu0 0
      %1114 = vmatpush1.bf16.msra.mxu0 0
      %1115 = vmatprep.subr.bf16.mxu0 0
      %1116 = vmatpush1.bf16.msra.mxu0 0
      %1117 = vmatprep.subr.bf16.mxu0 0
      %1118 = vmatpush1.bf16.msra.mxu0 0
      %1119 = vmatprep.subr.bf16.mxu0 0
      %1120 = vmatpush1.bf16.msra.mxu0 0
      %1121 = vmatprep.mubr.bf16.mxu0 0
      %1122 = vmatmul.mubr.bf16.gmra.mrb[0].mxu0 %v1084
      %v1123 = vpop.f32.mrb[0].mxu0
      %v1124 = vadd.f32 %v1081, %v1123
      %v1125 = vpop.f32.mrb[0].mxu0
      %v1126 = vpop.f32.mrb[0].mxu0
      %v1127 = vpop.f32.mrb[0].mxu0
      %1128 = vdwg.mxu0
      %v1129 = vmax.f32 %v1124, 0.0
      %v1131 = vlaneseq
      %v1132 = vshrl.u32 %v1131, 7
      %v1133 = vsub.s32 0, %v1132
      %v1134 = vrot.slane %v633, %v1133
      %v1136 = vmul.f32 %v1129, %v1134
      %v1137 = vld [vmem:[%s11] sm:$0xff]
      %1138 = vrot.lane.b32.xlu0 %v1136, 11
      %v1139 = vpop.permute.xlu0 %1138
      %1140 = vrot.lane.b32.xlu0 %v1136, 10
      %v1141 = vpop.permute.xlu0 %1140
      %1142 = vrot.lane.b32.xlu0 %v1136, 9
      %v1143 = vpop.permute.xlu0 %1142
      %1144 = vrot.lane.b32.xlu0 %v1136, 1
      %v1145 = vpop.permute.xlu0 %1144
      %1146 = vrot.lane.b32.xlu0 %v1136, 127
      %v1147 = vpop.permute.xlu0 %1146
      %1148 = vrot.lane.b32.xlu0 %v1136, 119
      %v1149 = vpop.permute.xlu0 %1148
      %1150 = vrot.lane.b32.xlu0 %v1136, 118
      %v1151 = vpop.permute.xlu0 %1150
      %1152 = vrot.lane.b32.xlu0 %v1136, 117
      %v1153 = vpop.permute.xlu0 %1152
      %v1154 = vpack.c.bf16 %v1141, %v1139
      %v1155 = vpack.c.bf16 %v1145, %v1143
      %v1156 = vpack.c.bf16 %v1147, %v1136
      %v1157 = vpack.c.bf16 %v1151, %v1149
      %v1158 = vpack.c.bf16 %v1153, %v1153
      %v1159 = vld [vmem:[%s10] sm:$0xf]
      %1161 = vset.pattern.permute.xlu0 0
      %1162 = vperm.xlu0 %1161, %v1137
      %v1163 = vpop.permute.xlu0 %1162
      %v1166 = vsel %vm742, %v1159, 0
      %v1169 = vsel %vm746, %v1158, 0
      %1171 = vmatprep.subr.bf16.mxu0 0
      %1172 = vmatpush1.bf16.msra.mxu0 %v1154
      %1173 = vmatprep.subr.bf16.mxu0 0
      %1174 = vmatpush1.bf16.msra.mxu0 %v1155
      %1175 = vmatprep.subr.bf16.mxu0 0
      %1176 = vmatpush1.bf16.msra.mxu0 %v1156
      %1177 = vmatprep.subr.bf16.mxu0 0
      %1178 = vmatpush1.bf16.msra.mxu0 %v1157
      %1179 = vmatprep.subr.bf16.mxu0 0
      %1180 = vmatpush1.bf16.msra.mxu0 %v1169
      %1181 = vmatprep.subr.bf16.mxu0 0
      %1182 = vmatpush1.bf16.msra.mxu0 0
      %1183 = vmatprep.subr.bf16.mxu0 0
      %1184 = vmatpush1.bf16.msra.mxu0 0
      %1185 = vmatprep.subr.bf16.mxu0 0
      %1186 = vmatpush1.bf16.msra.mxu0 0
      %1187 = vmatprep.subr.bf16.mxu0 0
      %1188 = vmatpush1.bf16.msra.mxu0 0
      %1189 = vmatprep.subr.bf16.mxu0 0
      %1190 = vmatpush1.bf16.msra.mxu0 0
      %1191 = vmatprep.subr.bf16.mxu0 0
      %1192 = vmatpush1.bf16.msra.mxu0 0
      %1193 = vmatprep.subr.bf16.mxu0 0
      %1194 = vmatpush1.bf16.msra.mxu0 0
      %1195 = vmatprep.subr.bf16.mxu0 0
      %1196 = vmatpush1.bf16.msra.mxu0 0
      %1197 = vmatprep.subr.bf16.mxu0 0
      %1198 = vmatpush1.bf16.msra.mxu0 0
      %1199 = vmatprep.subr.bf16.mxu0 0
      %1200 = vmatpush1.bf16.msra.mxu0 0
      %1201 = vmatprep.subr.bf16.mxu0 0
      %1202 = vmatpush1.bf16.msra.mxu0 0
      %1203 = vmatprep.mubr.bf16.mxu0 0
      %1204 = vmatmul.mubr.bf16.gmra.mrb[0].mxu0 %v1166
      %v1205 = vpop.f32.mrb[0].mxu0
      %v1206 = vadd.f32 %v1163, %v1205
      %v1207 = vpop.f32.mrb[0].mxu0
      %v1208 = vpop.f32.mrb[0].mxu0
      %v1209 = vpop.f32.mrb[0].mxu0
      %1210 = vdwg.mxu0
      %v1211 = vadd.f32 %v1206, %v637
      %v1212 = vmax.f32 %v1211, 0.0
      %v1213 = vld [vmem:[%s12] sm:$0xf]
      %v1214 = vpack.c.bf16 %v1212, %v1212
      %v1215 = vld [vmem:[%s13] sm:$0xff]
      %1217 = vset.pattern.permute.xlu0 0
      %1218 = vperm.xlu0 %1217, %v1215
      %v1219 = vpop.permute.xlu0 %1218
      %vm1221 = vcmask 64512
      %v1223 = vsel %vm1221, %v1213, 0
      %v1226 = vsel %vm746, %v1214, 0
      %1228 = vmatprep.subr.bf16.mxu0 0
      %1229 = vmatpush1.bf16.msra.mxu0 %v1226
      %1230 = vmatprep.subr.bf16.mxu0 0
      %1231 = vmatpush1.bf16.msra.mxu0 0
      %1232 = vmatprep.subr.bf16.mxu0 0
      %1233 = vmatpush1.bf16.msra.mxu0 0
      %1234 = vmatprep.subr.bf16.mxu0 0
      %1235 = vmatpush1.bf16.msra.mxu0 0
      %1236 = vmatprep.subr.bf16.mxu0 0
      %1237 = vmatpush1.bf16.msra.mxu0 0
      %1238 = vmatprep.subr.bf16.mxu0 0
      %1239 = vmatpush1.bf16.msra.mxu0 0
      %1240 = vmatprep.subr.bf16.mxu0 0
      %1241 = vmatpush1.bf16.msra.mxu0 0
      %1242 = vmatprep.subr.bf16.mxu0 0
      %1243 = vmatpush1.bf16.msra.mxu0 0
      %1244 = vmatprep.subr.bf16.mxu0 0
      %1245 = vmatpush1.bf16.msra.mxu0 0
      %1246 = vmatprep.subr.bf16.mxu0 0
      %1247 = vmatpush1.bf16.msra.mxu0 0
      %1248 = vmatprep.subr.bf16.mxu0 0
      %1249 = vmatpush1.bf16.msra.mxu0 0
      %1250 = vmatprep.subr.bf16.mxu0 0
      %1251 = vmatpush1.bf16.msra.mxu0 0
      %1252 = vmatprep.subr.bf16.mxu0 0
      %1253 = vmatpush1.bf16.msra.mxu0 0
      %1254 = vmatprep.subr.bf16.mxu0 0
      %1255 = vmatpush1.bf16.msra.mxu0 0
      %1256 = vmatprep.subr.bf16.mxu0 0
      %1257 = vmatpush1.bf16.msra.mxu0 0
      %1258 = vmatprep.subr.bf16.mxu0 0
      %1259 = vmatpush1.bf16.msra.mxu0 0
      %1260 = vmatprep.mubr.bf16.mxu0 0
      %1261 = vmatmul.mubr.bf16.gmra.mrb[0].mxu0 %v1223
      %v1262 = vpop.f32.mrb[0].mxu0
      %v1263 = vadd.f32 %v1219, %v1262
      %v1264 = vpop.f32.mrb[0].mxu0
      %v1265 = vpop.f32.mrb[0].mxu0
      %v1266 = vpop.f32.mrb[0].mxu0
      %1267 = vdwg.mxu0
      %v1268 = vpack.c.bf16 %v1263, %v1263
      %v1269 = vld [vmem:[%s16] sm:$0xff]
      %v1270 = vld [vmem:[%s16 + $0x8] sm:$0xf]
      %v1271 = vld [vmem:[%s16 + $0xc] sm:$0xff]
      %v1272 = vld [vmem:[%s16 + $0x14] sm:$0xf]
      %v1273 = vld [vmem:[%s16 + $0x18] sm:$0xff]
      %v1274 = vld [vmem:[%s16 + $0x20] sm:$0xf]
      %v1275 = vld [vmem:[%s16 + $0x24] sm:$0xff]
      %v1276 = vld [vmem:[%s16 + $0x2c] sm:$0xf]
      %v1277 = vld [vmem:[%s16 + $0x30] sm:$0xff]
      %v1278 = vld [vmem:[%s16 + $0x38] sm:$0xf]
      %v1279 = vld [vmem:[%s16 + $0x3c] sm:$0xff]
      %v1280 = vld [vmem:[%s16 + $0x44] sm:$0xf]
      %v1281 = vld [vmem:[%s16 + $0x48] sm:$0xff]
      %v1282 = vld [vmem:[%s16 + $0x50] sm:$0xf]
      %v1283 = vld [vmem:[%s16 + $0x54] sm:$0xff]
      %v1284 = vld [vmem:[%s16 + $0x5c] sm:$0xf]
      %v1285 = vld [vmem:[%s16 + $0x60] sm:$0xff]
      %v1286 = vld [vmem:[%s16 + $0x68] sm:$0xf]
      %v1287 = vld [vmem:[%s16 + $0x6c] sm:$0xff]
      %v1288 = vld [vmem:[%s16 + $0x74] sm:$0xf]
      %v1289 = vld [vmem:[%s16 + $0x78] sm:$0xff]
      %v1290 = vld [vmem:[%s16 + $0x80] sm:$0xf]
      %v1291 = vld [vmem:[%s16 + $0x84] sm:$0xff]
      %v1292 = vld [vmem:[%s16 + $0x8c] sm:$0xf]
      %v1293 = vld [vmem:[%s16 + $0x90] sm:$0xff]
      %v1294 = vld [vmem:[%s16 + $0x98] sm:$0xf]
      %v1295 = vld [vmem:[%s16 + $0x9c] sm:$0xff]
      %v1296 = vld [vmem:[%s16 + $0xa4] sm:$0xf]
      %v1297 = vld [vmem:[%s16 + $0xa8] sm:$0xff]
      %v1298 = vld [vmem:[%s16 + $0xb0] sm:$0xf]
      %v1299 = vld [vmem:[%s16 + $0xb4] sm:$0xff]
      %v1300 = vld [vmem:[%s16 + $0xbc] sm:$0xf]
      %v1333 = vunpack.c.l.b16 %v1269
      %v1334 = vunpack.c.h.b16 %v1269
      %v1335 = vunpack.c.l.b16 %v1270
      %v1336 = vunpack.c.l.b16 %v1271
      %v1337 = vunpack.c.h.b16 %v1271
      %v1338 = vunpack.c.l.b16 %v1272
      %v1339 = vunpack.c.l.b16 %v1273
      %v1340 = vunpack.c.h.b16 %v1273
      %v1341 = vunpack.c.l.b16 %v1274
      %v1342 = vunpack.c.l.b16 %v1275
      %v1343 = vunpack.c.h.b16 %v1275
      %v1344 = vunpack.c.l.b16 %v1276
      %v1345 = vunpack.c.l.b16 %v1277
      %v1346 = vunpack.c.h.b16 %v1277
      %v1347 = vunpack.c.l.b16 %v1278
      %v1348 = vunpack.c.l.b16 %v1279
      %v1349 = vunpack.c.h.b16 %v1279
      %v1350 = vunpack.c.l.b16 %v1280
      %v1351 = vunpack.c.l.b16 %v1281
      %v1352 = vunpack.c.h.b16 %v1281
      %v1353 = vunpack.c.l.b16 %v1282
      %v1354 = vunpack.c.l.b16 %v1283
      %v1355 = vunpack.c.h.b16 %v1283
      %v1356 = vunpack.c.l.b16 %v1284
      %v1357 = vunpack.c.l.b16 %v1285
      %v1358 = vunpack.c.h.b16 %v1285
      %v1359 = vunpack.c.l.b16 %v1286
      %v1360 = vunpack.c.l.b16 %v1287
      %v1361 = vunpack.c.h.b16 %v1287
      %v1362 = vunpack.c.l.b16 %v1288
      %v1363 = vunpack.c.l.b16 %v1289
      %v1364 = vunpack.c.h.b16 %v1289
      %v1365 = vunpack.c.l.b16 %v1290
      %v1366 = vunpack.c.l.b16 %v1291
      %v1367 = vunpack.c.h.b16 %v1291
      %v1368 = vunpack.c.l.b16 %v1292
      %v1369 = vunpack.c.l.b16 %v1293
      %v1370 = vunpack.c.h.b16 %v1293
      %v1371 = vunpack.c.l.b16 %v1294
      %v1372 = vunpack.c.l.b16 %v1295
      %v1373 = vunpack.c.h.b16 %v1295
      %v1374 = vunpack.c.l.b16 %v1296
      %v1375 = vunpack.c.l.b16 %v1297
      %v1376 = vunpack.c.h.b16 %v1297
      %v1377 = vunpack.c.l.b16 %v1298
      %v1378 = vunpack.c.l.b16 %v1299
      %v1379 = vunpack.c.h.b16 %v1299
      %v1380 = vunpack.c.l.b16 %v1300
      %v1381 = vpack.c.b16 %v1336, %v1333
      %v1382 = vpack.c.b16 %v1337, %v1334
      %v1383 = vpack.c.b16 %v1338, %v1335
      %v1384 = vpack.c.b16 %v1342, %v1339
      %v1385 = vpack.c.b16 %v1343, %v1340
      %v1386 = vpack.c.b16 %v1344, %v1341
      %v1387 = vpack.c.b16 %v1348, %v1345
      %v1388 = vpack.c.b16 %v1349, %v1346
      %v1389 = vpack.c.b16 %v1350, %v1347
      %v1390 = vpack.c.b16 %v1354, %v1351
      %v1391 = vpack.c.b16 %v1355, %v1352
      %v1392 = vpack.c.b16 %v1356, %v1353
      %v1393 = vpack.c.b16 %v1360, %v1357
      %v1394 = vpack.c.b16 %v1361, %v1358
      %v1395 = vpack.c.b16 %v1362, %v1359
      %v1396 = vpack.c.b16 %v1366, %v1363
      %v1397 = vpack.c.b16 %v1367, %v1364
      %v1398 = vpack.c.b16 %v1368, %v1365
      %v1399 = vpack.c.b16 %v1372, %v1369
      %v1400 = vpack.c.b16 %v1373, %v1370
      %v1401 = vpack.c.b16 %v1374, %v1371
      %v1402 = vpack.c.b16 %v1378, %v1375
      %v1403 = vpack.c.b16 %v1379, %v1376
      %v1404 = vpack.c.b16 %v1380, %v1377
      %1429 = vmatprep.subr.bf16.mxu0 %v1382
      %1430 = vmatpush1.bf16.msra.mxu0 %v1381
      %1431 = vmatprep.subr.bf16.mxu0 %v1385
      %1432 = vmatpush1.bf16.msra.mxu0 %v1384
      %1433 = vmatprep.subr.bf16.mxu0 %v1388
      %1434 = vmatpush1.bf16.msra.mxu0 %v1387
      %1435 = vmatprep.subr.bf16.mxu0 %v1391
      %1436 = vmatpush1.bf16.msra.mxu0 %v1390
      %1437 = vmatprep.subr.bf16.mxu0 %v1394
      %1438 = vmatpush1.bf16.msra.mxu0 %v1393
      %1439 = vmatprep.subr.bf16.mxu0 %v1397
      %1440 = vmatpush1.bf16.msra.mxu0 %v1396
      %1441 = vmatprep.subr.bf16.mxu0 %v1400
      %1442 = vmatpush1.bf16.msra.mxu0 %v1399
      %1443 = vmatprep.subr.bf16.mxu0 %v1403
      %1444 = vmatpush1.bf16.msra.mxu0 %v1402
      %1445 = vmatprep.subr.bf16.mxu0 0
      %1446 = vmatpush1.bf16.msra.mxu0 0
      %1447 = vmatprep.subr.bf16.mxu0 0
      %1448 = vmatpush1.bf16.msra.mxu0 0
      %1449 = vmatprep.subr.bf16.mxu0 0
      %1450 = vmatpush1.bf16.msra.mxu0 0
      %1451 = vmatprep.subr.bf16.mxu0 0
      %1452 = vmatpush1.bf16.msra.mxu0 0
      %1453 = vmatprep.subr.bf16.mxu0 0
      %1454 = vmatpush1.bf16.msra.mxu0 0
      %1455 = vmatprep.subr.bf16.mxu0 0
      %1456 = vmatpush1.bf16.msra.mxu0 0
      %1457 = vmatprep.subr.bf16.mxu0 0
      %1458 = vmatpush1.bf16.msra.mxu0 0
      %1459 = vmatprep.subr.bf16.mxu0 0
      %1460 = vmatpush1.bf16.msra.mxu0 0
      %1461 = vmatprep.mubr.bf16.mxu0 0
      %1462 = vmatmul.mubr.bf16.gmra.mrb[0].mxu0 %v1268
      %v1463 = vpop.f32.mrb[0].mxu0
      %v1464 = vadd.f32 0.0, %v1463
      %v1465 = vpop.f32.mrb[0].mxu0
      %v1466 = vadd.f32 0.0, %v1465
      %v1467 = vpop.f32.mrb[0].mxu0
      %v1468 = vpop.f32.mrb[0].mxu0
      %1469 = vdwg.mxu0
      %1470 = vmatprep.subr.bf16.mxu0 0
      %1471 = vmatpush1.bf16.msra.mxu0 %v1383
      %1472 = vmatprep.subr.bf16.mxu0 0
      %1473 = vmatpush1.bf16.msra.mxu0 %v1386
      %1474 = vmatprep.subr.bf16.mxu0 0
      %1475 = vmatpush1.bf16.msra.mxu0 %v1389
      %1476 = vmatprep.subr.bf16.mxu0 0
      %1477 = vmatpush1.bf16.msra.mxu0 %v1392
      %1478 = vmatprep.subr.bf16.mxu0 0
      %1479 = vmatpush1.bf16.msra.mxu0 %v1395
      %1480 = vmatprep.subr.bf16.mxu0 0
      %1481 = vmatpush1.bf16.msra.mxu0 %v1398
      %1482 = vmatprep.subr.bf16.mxu0 0
      %1483 = vmatpush1.bf16.msra.mxu0 %v1401
      %1484 = vmatprep.subr.bf16.mxu0 0
      %1485 = vmatpush1.bf16.msra.mxu0 %v1404
      %1486 = vmatprep.subr.bf16.mxu0 0
      %1487 = vmatpush1.bf16.msra.mxu0 0
      %1488 = vmatprep.subr.bf16.mxu0 0
      %1489 = vmatpush1.bf16.msra.mxu0 0
      %1490 = vmatprep.subr.bf16.mxu0 0
      %1491 = vmatpush1.bf16.msra.mxu0 0
      %1492 = vmatprep.subr.bf16.mxu0 0
      %1493 = vmatpush1.bf16.msra.mxu0 0
      %1494 = vmatprep.subr.bf16.mxu0 0
      %1495 = vmatpush1.bf16.msra.mxu0 0
      %1496 = vmatprep.subr.bf16.mxu0 0
      %1497 = vmatpush1.bf16.msra.mxu0 0
      %1498 = vmatprep.subr.bf16.mxu0 0
      %1499 = vmatpush1.bf16.msra.mxu0 0
      %1500 = vmatprep.subr.bf16.mxu0 0
      %1501 = vmatpush1.bf16.msra.mxu0 0
      %1502 = vmatprep.mubr.bf16.mxu0 0
      %1503 = vmatmul.mubr.bf16.gmra.mrb[0].mxu0 %v1268
      %v1504 = vpop.f32.mrb[0].mxu0
      %v1505 = vadd.f32 0.0, %v1504
      %v1506 = vpop.f32.mrb[0].mxu0
      %v1507 = vpop.f32.mrb[0].mxu0
      %v1508 = vpop.f32.mrb[0].mxu0
      %1509 = vdwg.mxu0
      %v1510 = vadd.f32 %v1052, %v1464
      %v1511 = vadd.f32 %v1053, %v1466
      %v1512 = vadd.f32 %v1054, %v1505
      %v1513 = vmax.f32 %v1510, 0.0
      %v1514 = vmax.f32 %v1511, 0.0
      %v1515 = vmax.f32 %v1512, 0.0
      %1516 = vst [vmem:[%s626] sm:$0xff] %v1513
      %1517 = vst [vmem:[%s626 + $0x8] sm:$0xff] %v1514
      %1518 = vst [vmem:[%s626 + $0x10] sm:$0xff] %v1515
      %1519 = vrot.lane.b32.xlu0 %v1052, 19
      %v1520 = vpop.permute.xlu0 %1519
      %1521 = vrot.lane.b32.xlu0 %v1053, 19
      %v1522 = vpop.permute.xlu0 %1521
      %1523 = vrot.lane.b32.xlu0 %v1054, 19
      %v1524 = vpop.permute.xlu0 %1523
      %v1525 = vsel %vm647, %v1522, %v1524
      %v1526 = vsel %vm647, %v1520, %v1522
      %v1527 = vsel %vm647, %v1524, %v1520
      %1528 = vrot.lane.b32.xlu0 %v1052, 18
      %v1529 = vpop.permute.xlu0 %1528
      %1530 = vrot.lane.b32.xlu0 %v1053, 18
      %v1531 = vpop.permute.xlu0 %1530
      %1532 = vrot.lane.b32.xlu0 %v1054, 18
      %v1533 = vpop.permute.xlu0 %1532
      %v1534 = vsel %vm657, %v1531, %v1533
      %v1535 = vsel %vm657, %v1529, %v1531
      %v1536 = vsel %vm657, %v1533, %v1529
      %1537 = vrot.lane.b32.xlu0 %v1052, 17
      %v1538 = vpop.permute.xlu0 %1537
      %1539 = vrot.lane.b32.xlu0 %v1053, 17
      %v1540 = vpop.permute.xlu0 %1539
      %1541 = vrot.lane.b32.xlu0 %v1054, 17
      %v1542 = vpop.permute.xlu0 %1541
      %v1543 = vsel %vm667, %v1540, %v1542
      %v1544 = vsel %vm667, %v1538, %v1540
      %v1545 = vsel %vm667, %v1542, %v1538
      %1546 = vrot.lane.b32.xlu0 %v1052, 1
      %v1547 = vpop.permute.xlu0 %1546
      %1548 = vrot.lane.b32.xlu0 %v1053, 1
      %v1549 = vpop.permute.xlu0 %1548
      %1550 = vrot.lane.b32.xlu0 %v1054, 1
      %v1551 = vpop.permute.xlu0 %1550
      %v1552 = vsel %vm677, %v1549, %v1551
      %v1553 = vsel %vm677, %v1547, %v1549
      %v1554 = vsel %vm677, %v1551, %v1547
      %1555 = vrot.lane.b32.xlu0 %v1052, 127
      %v1556 = vpop.permute.xlu0 %1555
      %1557 = vrot.lane.b32.xlu0 %v1053, 127
      %v1558 = vpop.permute.xlu0 %1557
      %1559 = vrot.lane.b32.xlu0 %v1054, 127
      %v1560 = vpop.permute.xlu0 %1559
      %v1561 = vsel %vm687, %v1558, %v1560
      %v1562 = vsel %vm687, %v1556, %v1558
      %v1563 = vsel %vm687, %v1560, %v1556
      %1564 = vrot.lane.b32.xlu0 %v1052, 111
      %v1565 = vpop.permute.xlu0 %1564
      %1566 = vrot.lane.b32.xlu0 %v1053, 111
      %v1567 = vpop.permute.xlu0 %1566
      %1568 = vrot.lane.b32.xlu0 %v1054, 111
      %v1569 = vpop.permute.xlu0 %1568
      %v1570 = vsel %vm697, %v1567, %v1569
      %v1571 = vsel %vm697, %v1565, %v1567
      %v1572 = vsel %vm697, %v1569, %v1565
      %1573 = vrot.lane.b32.xlu0 %v1052, 110
      %v1574 = vpop.permute.xlu0 %1573
      %1575 = vrot.lane.b32.xlu0 %v1053, 110
      %v1576 = vpop.permute.xlu0 %1575
      %1577 = vrot.lane.b32.xlu0 %v1054, 110
      %v1578 = vpop.permute.xlu0 %1577
      %v1579 = vsel %vm707, %v1576, %v1578
      %v1580 = vsel %vm707, %v1574, %v1576
      %v1581 = vsel %vm707, %v1578, %v1574
      %1582 = vrot.lane.b32.xlu0 %v1052, 109
      %v1583 = vpop.permute.xlu0 %1582
      %1584 = vrot.lane.b32.xlu0 %v1053, 109
      %v1585 = vpop.permute.xlu0 %1584
      %1586 = vrot.lane.b32.xlu0 %v1054, 109
      %v1587 = vpop.permute.xlu0 %1586
      %v1588 = vsel %vm717, %v1585, %v1587
      %v1589 = vsel %vm717, %v1583, %v1585
      %v1590 = vsel %vm717, %v1587, %v1583
      %v1591 = vpack.c.bf16 %v1536, %v1527
      %v1592 = vpack.c.bf16 %v1535, %v1526
      %v1593 = vpack.c.bf16 %v1534, %v1525
      %v1594 = vpack.c.bf16 %v1554, %v1545
      %v1595 = vpack.c.bf16 %v1553, %v1544
      %v1596 = vpack.c.bf16 %v1552, %v1543
      %v1597 = vpack.c.bf16 %v1562, %v1052
      %v1598 = vpack.c.bf16 %v1561, %v1053
      %v1599 = vpack.c.bf16 %v1563, %v1054
      %v1600 = vpack.c.bf16 %v1580, %v1571
      %v1601 = vpack.c.bf16 %v1579, %v1570
      %v1602 = vpack.c.bf16 %v1581, %v1572
      %v1603 = vpack.c.bf16 %v1589, %v1589
      %v1604 = vpack.c.bf16 %v1588, %v1588
      %v1605 = vpack.c.bf16 %v1590, %v1590
      %v1606 = vld [vmem:[%s14] sm:$0xf]
      %v1608 = vsel %vm742, %v1606, 0
      %v1611 = vsel %vm746, %v1603, 0
      %v1614 = vsel %vm746, %v1604, 0
      %v1617 = vsel %vm746, %v1605, 0
      %1619 = vmatprep.subr.bf16.mxu0 %v1592
      %1620 = vmatpush1.bf16.msra.mxu0 %v1591
      %1621 = vmatprep.subr.bf16.mxu0 %v1595
      %1622 = vmatpush1.bf16.msra.mxu0 %v1594
      %1623 = vmatprep.subr.bf16.mxu0 %v1598
      %1624 = vmatpush1.bf16.msra.mxu0 %v1597
      %1625 = vmatprep.subr.bf16.mxu0 %v1601
      %1626 = vmatpush1.bf16.msra.mxu0 %v1600
      %1627 = vmatprep.subr.bf16.mxu0 %v1614
      %1628 = vmatpush1.bf16.msra.mxu0 %v1611
      %1629 = vmatprep.subr.bf16.mxu0 0
      %1630 = vmatpush1.bf16.msra.mxu0 0
      %1631 = vmatprep.subr.bf16.mxu0 0
      %1632 = vmatpush1.bf16.msra.mxu0 0
      %1633 = vmatprep.subr.bf16.mxu0 0
      %1634 = vmatpush1.bf16.msra.mxu0 0
      %1635 = vmatprep.subr.bf16.mxu0 0
      %1636 = vmatpush1.bf16.msra.mxu0 0
      %1637 = vmatprep.subr.bf16.mxu0 0
      %1638 = vmatpush1.bf16.msra.mxu0 0
      %1639 = vmatprep.subr.bf16.mxu0 0
      %1640 = vmatpush1.bf16.msra.mxu0 0
      %1641 = vmatprep.subr.bf16.mxu0 0
      %1642 = vmatpush1.bf16.msra.mxu0 0
      %1643 = vmatprep.subr.bf16.mxu0 0
      %1644 = vmatpush1.bf16.msra.mxu0 0
      %1645 = vmatprep.subr.bf16.mxu0 0
      %1646 = vmatpush1.bf16.msra.mxu0 0
      %1647 = vmatprep.subr.bf16.mxu0 0
      %1648 = vmatpush1.bf16.msra.mxu0 0
      %1649 = vmatprep.subr.bf16.mxu0 0
      %1650 = vmatpush1.bf16.msra.mxu0 0
      %1651 = vmatprep.mubr.bf16.mxu0 0
      %1652 = vmatmul.mubr.bf16.gmra.mrb[0].mxu0 %v1608
      %v1653 = vpop.f32.mrb[0].mxu0
      %v1654 = vadd.f32 0.0, %v1653
      %v1655 = vpop.f32.mrb[0].mxu0
      %v1656 = vadd.f32 0.0, %v1655
      %v1657 = vpop.f32.mrb[0].mxu0
      %v1658 = vpop.f32.mrb[0].mxu0
      %1659 = vdwg.mxu0
      %1660 = vmatprep.subr.bf16.mxu0 0
      %1661 = vmatpush1.bf16.msra.mxu0 %v1593
      %1662 = vmatprep.subr.bf16.mxu0 0
      %1663 = vmatpush1.bf16.msra.mxu0 %v1596
      %1664 = vmatprep.subr.bf16.mxu0 0
      %1665 = vmatpush1.bf16.msra.mxu0 %v1599
      %1666 = vmatprep.subr.bf16.mxu0 0
      %1667 = vmatpush1.bf16.msra.mxu0 %v1602
      %1668 = vmatprep.subr.bf16.mxu0 0
      %1669 = vmatpush1.bf16.msra.mxu0 %v1617
      %1670 = vmatprep.subr.bf16.mxu0 0
      %1671 = vmatpush1.bf16.msra.mxu0 0
      %1672 = vmatprep.subr.bf16.mxu0 0
      %1673 = vmatpush1.bf16.msra.mxu0 0
      %1674 = vmatprep.subr.bf16.mxu0 0
      %1675 = vmatpush1.bf16.msra.mxu0 0
      %1676 = vmatprep.subr.bf16.mxu0 0
      %1677 = vmatpush1.bf16.msra.mxu0 0
      %1678 = vmatprep.subr.bf16.mxu0 0
      %1679 = vmatpush1.bf16.msra.mxu0 0
      %1680 = vmatprep.subr.bf16.mxu0 0
      %1681 = vmatpush1.bf16.msra.mxu0 0
      %1682 = vmatprep.subr.bf16.mxu0 0
      %1683 = vmatpush1.bf16.msra.mxu0 0
      %1684 = vmatprep.subr.bf16.mxu0 0
      %1685 = vmatpush1.bf16.msra.mxu0 0
      %1686 = vmatprep.subr.bf16.mxu0 0
      %1687 = vmatpush1.bf16.msra.mxu0 0
      %1688 = vmatprep.subr.bf16.mxu0 0
      %1689 = vmatpush1.bf16.msra.mxu0 0
      %1690 = vmatprep.subr.bf16.mxu0 0
      %1691 = vmatpush1.bf16.msra.mxu0 0
      %1692 = vmatprep.mubr.bf16.mxu0 0
      %1693 = vmatmul.mubr.bf16.gmra.mrb[0].mxu0 %v1608
      %v1694 = vpop.f32.mrb[0].mxu0
      %v1695 = vadd.f32 0.0, %v1694
      %v1696 = vpop.f32.mrb[0].mxu0
      %v1697 = vpop.f32.mrb[0].mxu0
      %v1698 = vpop.f32.mrb[0].mxu0
      %1699 = vdwg.mxu0
      %v1700 = vpack.c.bf16 %v1654, %v1654
      %v1701 = vpack.c.bf16 %v1656, %v1656
      %v1702 = vpack.c.bf16 %v1695, %v1695
      %v1703 = vld [vmem:[%s17] sm:$0xf]
      %v1704 = vld [vmem:[%s17 + $0x4] sm:$0xf]
      %v1705 = vld [vmem:[%s17 + $0x8] sm:$0xf]
      %v1706 = vld [vmem:[%s17 + $0xc] sm:$0xf]
      %v1707 = vld [vmem:[%s17 + $0x10] sm:$0xf]
      %v1708 = vld [vmem:[%s17 + $0x14] sm:$0xf]
      %v1709 = vld [vmem:[%s17 + $0x18] sm:$0xf]
      %v1710 = vld [vmem:[%s17 + $0x1c] sm:$0xf]
      %v1711 = vld [vmem:[%s17 + $0x20] sm:$0xf]
      %v1712 = vld [vmem:[%s17 + $0x24] sm:$0xf]
      %v1713 = vld [vmem:[%s17 + $0x28] sm:$0xf]
      %v1714 = vld [vmem:[%s17 + $0x2c] sm:$0xf]
      %v1715 = vld [vmem:[%s17 + $0x30] sm:$0xf]
      %v1716 = vld [vmem:[%s17 + $0x34] sm:$0xf]
      %v1717 = vld [vmem:[%s17 + $0x38] sm:$0xf]
      %v1718 = vld [vmem:[%s17 + $0x3c] sm:$0xf]
      %v1719 = vld [vmem:[%s17 + $0x40] sm:$0xf]
      %v1720 = vld [vmem:[%s17 + $0x44] sm:$0xf]
      %v1721 = vld [vmem:[%s17 + $0x48] sm:$0xf]
      %v1722 = vld [vmem:[%s17 + $0x4c] sm:$0xf]
      %v1723 = vld [vmem:[%s17 + $0x50] sm:$0xf]
      %v1724 = vld [vmem:[%s17 + $0x54] sm:$0xf]
      %v1725 = vld [vmem:[%s17 + $0x58] sm:$0xf]
      %v1726 = vld [vmem:[%s17 + $0x5c] sm:$0xf]
      %v1727 = vld [vmem:[%s17 + $0x60] sm:$0xf]
      %v1728 = vld [vmem:[%s17 + $0x64] sm:$0xf]
      %v1729 = vld [vmem:[%s17 + $0x68] sm:$0xf]
      %v1730 = vld [vmem:[%s17 + $0x6c] sm:$0xf]
      %v1731 = vld [vmem:[%s17 + $0x70] sm:$0xf]
      %v1732 = vld [vmem:[%s17 + $0x74] sm:$0xf]
      %v1733 = vld [vmem:[%s17 + $0x78] sm:$0xf]
      %v1734 = vld [vmem:[%s17 + $0x7c] sm:$0xf]
      %v1735 = vld [vmem:[%s17 + $0x80] sm:$0xf]
      %v1736 = vld [vmem:[%s17 + $0x84] sm:$0xf]
      %v1737 = vld [vmem:[%s17 + $0x88] sm:$0xf]
      %v1738 = vld [vmem:[%s17 + $0x8c] sm:$0xf]
      %v1739 = vld [vmem:[%s17 + $0x90] sm:$0xf]
      %v1740 = vld [vmem:[%s17 + $0x94] sm:$0xf]
      %v1741 = vld [vmem:[%s17 + $0x98] sm:$0xf]
      %v1742 = vld [vmem:[%s17 + $0x9c] sm:$0xf]
      %v1743 = vld [vmem:[%s17 + $0xa0] sm:$0xf]
      %v1744 = vld [vmem:[%s17 + $0xa4] sm:$0xf]
      %v1745 = vld [vmem:[%s17 + $0xa8] sm:$0xf]
      %v1746 = vld [vmem:[%s17 + $0xac] sm:$0xf]
      %v1747 = vld [vmem:[%s17 + $0xb0] sm:$0xf]
      %v1748 = vld [vmem:[%s17 + $0xb4] sm:$0xf]
      %v1749 = vld [vmem:[%s17 + $0xb8] sm:$0xf]
      %v1750 = vld [vmem:[%s17 + $0xbc] sm:$0xf]
      %v1799 = vunpack.c.l.b16 %v1703
      %v1800 = vunpack.c.l.b16 %v1704
      %v1801 = vunpack.c.l.b16 %v1705
      %v1802 = vunpack.c.l.b16 %v1706
      %v1803 = vunpack.c.l.b16 %v1707
      %v1804 = vunpack.c.l.b16 %v1708
      %v1805 = vunpack.c.l.b16 %v1709
      %v1806 = vunpack.c.l.b16 %v1710
      %v1807 = vunpack.c.l.b16 %v1711
      %v1808 = vunpack.c.l.b16 %v1712
      %v1809 = vunpack.c.l.b16 %v1713
      %v1810 = vunpack.c.l.b16 %v1714
      %v1811 = vunpack.c.l.b16 %v1715
      %v1812 = vunpack.c.l.b16 %v1716
      %v1813 = vunpack.c.l.b16 %v1717
      %v1814 = vunpack.c.l.b16 %v1718
      %v1815 = vunpack.c.l.b16 %v1719
      %v1816 = vunpack.c.l.b16 %v1720
      %v1817 = vunpack.c.l.b16 %v1721
      %v1818 = vunpack.c.l.b16 %v1722
      %v1819 = vunpack.c.l.b16 %v1723
      %v1820 = vunpack.c.l.b16 %v1724
      %v1821 = vunpack.c.l.b16 %v1725
      %v1822 = vunpack.c.l.b16 %v1726
      %v1823 = vunpack.c.l.b16 %v1727
      %v1824 = vunpack.c.l.b16 %v1728
      %v1825 = vunpack.c.l.b16 %v1729
      %v1826 = vunpack.c.l.b16 %v1730
      %v1827 = vunpack.c.l.b16 %v1731
      %v1828 = vunpack.c.l.b16 %v1732
      %v1829 = vunpack.c.l.b16 %v1733
      %v1830 = vunpack.c.l.b16 %v1734
      %v1831 = vunpack.c.l.b16 %v1735
      %v1832 = vunpack.c.l.b16 %v1736
      %v1833 = vunpack.c.l.b16 %v1737
      %v1834 = vunpack.c.l.b16 %v1738
      %v1835 = vunpack.c.l.b16 %v1739
      %v1836 = vunpack.c.l.b16 %v1740
      %v1837 = vunpack.c.l.b16 %v1741
      %v1838 = vunpack.c.l.b16 %v1742
      %v1839 = vunpack.c.l.b16 %v1743
      %v1840 = vunpack.c.l.b16 %v1744
      %v1841 = vunpack.c.l.b16 %v1745
      %v1842 = vunpack.c.l.b16 %v1746
      %v1843 = vunpack.c.l.b16 %v1747
      %v1844 = vunpack.c.l.b16 %v1748
      %v1845 = vunpack.c.l.b16 %v1749
      %v1846 = vunpack.c.l.b16 %v1750
      %v1847 = vpack.c.b16 %v1800, %v1799
      %v1848 = vpack.c.b16 %v1802, %v1801
      %v1849 = vpack.c.b16 %v1804, %v1803
      %v1850 = vpack.c.b16 %v1806, %v1805
      %v1851 = vpack.c.b16 %v1808, %v1807
      %v1852 = vpack.c.b16 %v1810, %v1809
      %v1853 = vpack.c.b16 %v1812, %v1811
      %v1854 = vpack.c.b16 %v1814, %v1813
      %v1855 = vpack.c.b16 %v1816, %v1815
      %v1856 = vpack.c.b16 %v1818, %v1817
      %v1857 = vpack.c.b16 %v1820, %v1819
      %v1858 = vpack.c.b16 %v1822, %v1821
      %v1859 = vpack.c.b16 %v1824, %v1823
      %v1860 = vpack.c.b16 %v1826, %v1825
      %v1861 = vpack.c.b16 %v1828, %v1827
      %v1862 = vpack.c.b16 %v1830, %v1829
      %v1863 = vpack.c.b16 %v1832, %v1831
      %v1864 = vpack.c.b16 %v1834, %v1833
      %v1865 = vpack.c.b16 %v1836, %v1835
      %v1866 = vpack.c.b16 %v1838, %v1837
      %v1867 = vpack.c.b16 %v1840, %v1839
      %v1868 = vpack.c.b16 %v1842, %v1841
      %v1869 = vpack.c.b16 %v1844, %v1843
      %v1870 = vpack.c.b16 %v1846, %v1845
      %1895 = vmatprep.subr.bf16.mxu0 0
      %1896 = vmatpush1.bf16.msra.mxu0 %v1847
      %1897 = vmatprep.subr.bf16.mxu0 0
      %1898 = vmatpush1.bf16.msra.mxu0 %v1848
      %1899 = vmatprep.subr.bf16.mxu0 0
      %1900 = vmatpush1.bf16.msra.mxu0 %v1849
      %1901 = vmatprep.subr.bf16.mxu0 0
      %1902 = vmatpush1.bf16.msra.mxu0 %v1850
      %1903 = vmatprep.subr.bf16.mxu0 0
      %1904 = vmatpush1.bf16.msra.mxu0 %v1851
      %1905 = vmatprep.subr.bf16.mxu0 0
      %1906 = vmatpush1.bf16.msra.mxu0 %v1852
      %1907 = vmatprep.subr.bf16.mxu0 0
      %1908 = vmatpush1.bf16.msra.mxu0 %v1853
      %1909 = vmatprep.subr.bf16.mxu0 0
      %1910 = vmatpush1.bf16.msra.mxu0 %v1854
      %1911 = vmatprep.subr.bf16.mxu0 0
      %1912 = vmatpush1.bf16.msra.mxu0 %v1855
      %1913 = vmatprep.subr.bf16.mxu0 0
      %1914 = vmatpush1.bf16.msra.mxu0 %v1856
      %1915 = vmatprep.subr.bf16.mxu0 0
      %1916 = vmatpush1.bf16.msra.mxu0 %v1857
      %1917 = vmatprep.subr.bf16.mxu0 0
      %1918 = vmatpush1.bf16.msra.mxu0 %v1858
      %1919 = vmatprep.subr.bf16.mxu0 0
      %1920 = vmatpush1.bf16.msra.mxu0 %v1859
      %1921 = vmatprep.subr.bf16.mxu0 0
      %1922 = vmatpush1.bf16.msra.mxu0 %v1860
      %1923 = vmatprep.subr.bf16.mxu0 0
      %1924 = vmatpush1.bf16.msra.mxu0 %v1861
      %1925 = vmatprep.subr.bf16.mxu0 0
      %1926 = vmatpush1.bf16.msra.mxu0 %v1862
      %1927 = vmatprep.mubr.bf16.mxu0 %v1701
      %1928 = vmatmul.mubr.bf16.gmra.mrb[0].mxu0 %v1700
      %v1929 = vpop.f32.mrb[0].mxu0
      %v1930 = vadd.f32 0.0, %v1929
      %v1931 = vpop.f32.mrb[0].mxu0
      %v1932 = vpop.f32.mrb[0].mxu0
      %v1933 = vpop.f32.mrb[0].mxu0
      %1934 = vdwg.mxu0
      %1935 = vmatprep.subr.bf16.mxu0 0
      %1936 = vmatpush1.bf16.msra.mxu0 %v1863
      %1937 = vmatprep.subr.bf16.mxu0 0
      %1938 = vmatpush1.bf16.msra.mxu0 %v1864
      %1939 = vmatprep.subr.bf16.mxu0 0
      %1940 = vmatpush1.bf16.msra.mxu0 %v1865
      %1941 = vmatprep.subr.bf16.mxu0 0
      %1942 = vmatpush1.bf16.msra.mxu0 %v1866
      %1943 = vmatprep.subr.bf16.mxu0 0
      %1944 = vmatpush1.bf16.msra.mxu0 %v1867
      %1945 = vmatprep.subr.bf16.mxu0 0
      %1946 = vmatpush1.bf16.msra.mxu0 %v1868
      %1947 = vmatprep.subr.bf16.mxu0 0
      %1948 = vmatpush1.bf16.msra.mxu0 %v1869
      %1949 = vmatprep.subr.bf16.mxu0 0
      %1950 = vmatpush1.bf16.msra.mxu0 %v1870
      %1951 = vmatprep.subr.bf16.mxu0 0
      %1952 = vmatpush1.bf16.msra.mxu0 0
      %1953 = vmatprep.subr.bf16.mxu0 0
      %1954 = vmatpush1.bf16.msra.mxu0 0
      %1955 = vmatprep.subr.bf16.mxu0 0
      %1956 = vmatpush1.bf16.msra.mxu0 0
      %1957 = vmatprep.subr.bf16.mxu0 0
      %1958 = vmatpush1.bf16.msra.mxu0 0
      %1959 = vmatprep.subr.bf16.mxu0 0
      %1960 = vmatpush1.bf16.msra.mxu0 0
      %1961 = vmatprep.subr.bf16.mxu0 0
      %1962 = vmatpush1.bf16.msra.mxu0 0
      %1963 = vmatprep.subr.bf16.mxu0 0
      %1964 = vmatpush1.bf16.msra.mxu0 0
      %1965 = vmatprep.subr.bf16.mxu0 0
      %1966 = vmatpush1.bf16.msra.mxu0 0
      %1967 = vmatprep.mubr.bf16.mxu0 0
      %1968 = vmatmul.mubr.bf16.gmra.mrb[0].mxu0 %v1702
      %v1969 = vpop.f32.mrb[0].mxu0
      %v1970 = vadd.f32 %v1930, %v1969
      %v1971 = vpop.f32.mrb[0].mxu0
      %v1972 = vpop.f32.mrb[0].mxu0
      %v1973 = vpop.f32.mrb[0].mxu0
      %1974 = vdwg.mxu0
      %v1975 = vadd.f32 %v1212, %v1970
      %v1976 = vld [vmem:[%s15] sm:$0xff]
      %1978 = vset.pattern.permute.xlu0 0
      %1979 = vperm.xlu0 %1978, %v1976
      %v1980 = vpop.permute.xlu0 %1979
      %v1982 = vadd.f32 %v1975, %v1980
      %v1983 = vmax.f32 %v1982, 0.0
      %v1984 = vmul.f32 %v1983, %v1134
      %1985 = vst [vmem:[%s630] sm:$0xff] %v1984
      %p1986 = scmp.lt.s32.totalorder %s31, 1
      %s1987 = scalar_select %p1986, %s31, 1
      %s1988 = smul.addr %s1987, 3
      %s1989 = smul.addr %s1988, 8
      %s1990 = scalar_lea.vmem %s18, %s1989
      %p1991 = scmp.lt.s32.totalorder %s31, 1
      %s1992 = scalar_select %p1991, %s31, 1
      %s1993 = smul.addr %s1992, 8
      %s1994 = scalar_lea.vmem %s19, %s1993
      // Predicated region
      $region93: #{hrm_forward_pallas.1} parent=91 // pred_check
        %p1995 = pneg %p437
      $region94: #{hrm_forward_pallas.1} parent=91 // pred_check_branch
        %1997 = sbr.rel (%p1995) target = $region96
      $region95: #{hrm_forward_pallas.1} parent=91 // pred_region
        _
      $region96: #{hrm_forward_pallas.1} parent=91 // pred_fallthru
        _
      // Predicated region
      $region97: #{hrm_forward_pallas.1} parent=91 // pred_check
        %p1998 = pneg %p463
      $region98: #{hrm_forward_pallas.1} parent=91 // pred_check_branch
        %2000 = sbr.rel (%p1998) target = $region100
      $region99: #{hrm_forward_pallas.1} parent=91 // pred_region
        _
      $region100: #{hrm_forward_pallas.1} parent=91 // pred_fallthru
        _
    $region92: #{hrm_forward_pallas.1} parent=5 // pred_fallthru
      _
    %p2001 = scmp.le.s32.totalorder 2, %s26
    // Predicated region
    $region101: #{hrm_forward_pallas.1} parent=5 // pred_check
      %p2002 = pneg %p2001
    $region102: #{hrm_forward_pallas.1} parent=5 // pred_check_branch
      %2004 = sbr.rel (%p2002) target = $region104
    $region103: #{hrm_forward_pallas.1} parent=5 // pred_region
      %s2005 = ssub.s32 %s26, 2
      // Predicated region
      $region105: #{hrm_forward_pallas.1} parent=103 // pred_check
        %p2006 = pneg %p443
      $region106: #{hrm_forward_pallas.1} parent=103 // pred_check_branch
        %2008 = sbr.rel (%p2006) target = $region108
      $region107: #{hrm_forward_pallas.1} parent=103 // pred_region
        %p2009 = scmp.lt.s32.totalorder %s32, 1
        %s2010 = scalar_select %p2009, %s32, 1
        %s2011 = smul.addr %s2010, 3
        %s2012 = smul.addr %s2011, 8
        %s2013 = scalar_lea.vmem %s18, %s2012
      $region108: #{hrm_forward_pallas.1} parent=103 // pred_fallthru
        _
      // Predicated region
      $region109: #{hrm_forward_pallas.1} parent=103 // pred_check
        %p2014 = pneg %p469
      $region110: #{hrm_forward_pallas.1} parent=103 // pred_check_branch
        %2016 = sbr.rel (%p2014) target = $region112
      $region111: #{hrm_forward_pallas.1} parent=103 // pred_region
        %p2017 = scmp.lt.s32.totalorder %s32, 1
        %s2018 = scalar_select %p2017, %s32, 1
        %s2019 = smul.addr %s2018, 8
        %s2020 = scalar_lea.vmem %s19, %s2019
      $region112: #{hrm_forward_pallas.1} parent=103 // pred_fallthru
        _
    $region104: #{hrm_forward_pallas.1} parent=5 // pred_fallthru
      _
  $region6: #{hrm_forward_pallas.1} parent=0 // loop_footer
    %s30 = sadd.s32 1, %s26
  $region7: #{hrm_forward_pallas.1} parent=0 // loop_footer_branch
    %25 = sbr.rel target = $region3
  $region8: #{hrm_forward_pallas.1} parent=0 // loop_exit
    _

</llo_original>
